<compile_context>
chip_gen: v7x
topology: tpu7x:2x2x1
jax: 0.10.0
libtpu: 0.0.40
codegen_flags: <defaults>
</compile_context>

<pallas_src>
import functools
import math

import jax
import jax.numpy as jnp
from jax.experimental import pallas as pl
from jax.experimental.pallas import tpu as pltpu

# ----------------------------- model config ---------------------------------
VOCAB = 32          # tiny vocab
SEQ = 8             # max_text_len (power of two; see index math in the kernel)
HIDDEN = 128        # hidden_size (ebd_dim) -- lane aligned
NUM_HEADS = 4
HEAD_DIM = HIDDEN // NUM_HEADS
FFN = 4 * HIDDEN
LN_EPS = 1e-12      # BERT layernorm eps

assert SEQ & (SEQ - 1) == 0, "SEQ must be a power of two (bitwise index math)"


# ------------------------------- fused kernel --------------------------------
def _encoder_kernel(ids_ref, kmask_ref, tok_ref, pos_ref,
                    ln0g_ref, ln0b_ref,
                    wq_ref, bq_ref, wk_ref, bk_ref, wv_ref, bv_ref,
                    wo_ref, bo_ref,
                    ln1g_ref, ln1b_ref,
                    w1_ref, b1_ref, w2_ref, b2_ref,
                    ln2g_ref, ln2b_ref,
                    o_ref, ctx_ref, *, batch, seq, cls_only):
    """Whole synthetic-BERT encoder for a (batch*seq, H) activation block."""
    n = batch * seq
    q_rows = batch if cls_only else n

    def layer_norm(x, g, b):
        mu = jnp.mean(x, axis=-1, keepdims=True)
        var = jnp.mean(jnp.square(x - mu), axis=-1, keepdims=True)
        return (x - mu) * jax.lax.rsqrt(var + LN_EPS) * g + b

    # ---- embedding lookup + positional add (one-hot matmuls on the MXU) ----
    ids = ids_ref[...]                                           # (n, 1) int32
    tok_oh = (ids == jax.lax.broadcasted_iota(jnp.int32, (n, VOCAB), 1)
              ).astype(jnp.float32)                              # (n, VOCAB)
    pos_idx = jax.lax.broadcasted_iota(jnp.int32, (n, seq), 0) & (seq - 1)
    pos_oh = (pos_idx == jax.lax.broadcasted_iota(jnp.int32, (n, seq), 1)
              ).astype(jnp.float32)                              # (n, seq)
    x = (jnp.dot(tok_oh, tok_ref[...], preferred_element_type=jnp.float32)
         + jnp.dot(pos_oh, pos_ref[...], preferred_element_type=jnp.float32))

    # ---- embedding LayerNorm ----
    x = layer_norm(x, ln0g_ref[...], ln0b_ref[...])              # (n, H) f32

    # ---- query-side rows: all rows, or only each example's [CLS] row ----
    col_idx = jax.lax.broadcasted_iota(jnp.int32, (q_rows, n), 1)
    if cls_only:
        # selection matrix: output row b picks source row b*seq ([CLS] of b)
        row_src = jax.lax.broadcasted_iota(jnp.int32, (q_rows, n), 0) * seq
        sel = (col_idx == row_src).astype(jnp.float32)           # (batch, n)
        x_q = jnp.dot(sel, x, preferred_element_type=jnp.float32)  # (batch, H)
    else:
        row_src = jax.lax.broadcasted_iota(jnp.int32, (q_rows, n), 0)
        x_q = x

    # same example  <=>  (row_src ^ col) < seq   (seq is a power of two)
    same_example = jnp.bitwise_xor(row_src, col_idx) < seq
    attend = jnp.logical_and(same_example, kmask_ref[...] > 0.5)  # (q_rows, n)
    bias = jnp.where(attend, 0.0, -1e9)

    # ---- multi-head self-attention ----
    q = jnp.dot(x_q, wq_ref[...], preferred_element_type=jnp.float32) + bq_ref[...]
    k = jnp.dot(x, wk_ref[...], preferred_element_type=jnp.float32) + bk_ref[...]
    v = jnp.dot(x, wv_ref[...], preferred_element_type=jnp.float32) + bv_ref[...]

    scale = 1.0 / math.sqrt(HEAD_DIM)
    for h in range(NUM_HEADS):                                   # static unroll
        sl = slice(h * HEAD_DIM, (h + 1) * HEAD_DIM)
        qh, kh, vh = q[:, sl], k[:, sl], v[:, sl]
        # scores = qh @ kh^T, contracting the head dim of both (no transpose)
        s = jax.lax.dot_general(qh, kh, (((1,), (1,)), ((), ())),
                                preferred_element_type=jnp.float32)
        s = s * scale + bias
        s = s - jnp.max(s, axis=-1, keepdims=True)
        p = jnp.exp(s)
        p = p * pl.reciprocal(jnp.sum(p, axis=-1, keepdims=True), approx=True)
        ctx_ref[:, sl] = jnp.dot(p, vh, preferred_element_type=jnp.float32)

    attn = (jnp.dot(ctx_ref[...], wo_ref[...],
                    preferred_element_type=jnp.float32) + bo_ref[...])

    # ---- residual + LN1 + FFN + residual + LN2 (query rows only) ----
    h1 = layer_norm(x_q + attn, ln1g_ref[...], ln1b_ref[...])
    ff = jnp.dot(h1, w1_ref[...], preferred_element_type=jnp.float32) + b1_ref[...]
    # TODO(synk): HF BERT uses exact erf GELU; the tanh approximation is used
    #             here for a guaranteed-safe TPU lowering.
    ff = jax.nn.gelu(ff, approximate=True)
    ff = jnp.dot(ff, w2_ref[...], preferred_element_type=jnp.float32) + b2_ref[...]
    out = layer_norm(h1 + ff, ln2g_ref[...], ln2b_ref[...])
    o_ref[...] = out.astype(o_ref.dtype)


# ------------------------------ pallas wrapper --------------------------------
def encoder_forward(params, ids, mask, *, return_seq=False):
    """Synthetic 1-layer BERT encoder, fully fused into one pallas_call.

    ids: (B, S) int32 token ids; mask: (B, S) {0,1} key mask.
    Returns (B, S, H) if return_seq else (B, H) ([CLS] rows).
    """
    B, S = ids.shape
    assert S == SEQ
    N = B * S
    q_rows = N if return_seq else B

    ids_col = ids.reshape(N, 1).astype(jnp.int32)
    key_mask = mask.reshape(1, N).astype(jnp.float32)

    operands = (
        ids_col, key_mask, params["tok_emb"], params["pos_emb"],
        params["ln0_g"], params["ln0_b"],
        params["wq"], params["bq"], params["wk"], params["bk"],
        params["wv"], params["bv"], params["wo"], params["bo"],
        params["ln1_g"], params["ln1_b"],
        params["w1"], params["b1"], params["w2"], params["b2"],
        params["ln2_g"], params["ln2_b"],
    )

    def full_spec(shape):
        return pl.BlockSpec(shape, lambda i: tuple(0 for _ in shape))

    out = pl.pallas_call(
        functools.partial(_encoder_kernel, batch=B, seq=S,
                          cls_only=not return_seq),
        out_shape=jax.ShapeDtypeStruct((q_rows, HIDDEN), jnp.float32),
        grid=(1,),  # one fat step: weights staged into VMEM once, no per-step overhead
        in_specs=[full_spec(a.shape) for a in operands],
        out_specs=full_spec((q_rows, HIDDEN)),
        scratch_shapes=[pltpu.VMEM((q_rows, HIDDEN), jnp.float32)],
        compiler_params=pltpu.CompilerParams(
            dimension_semantics=("arbitrary",)),
    )(*operands)

    if return_seq:
        return out.reshape(B, S, HIDDEN)
    return out


# ------------------------------ parameters -----------------------------------
def init_params(key):
    ks = jax.random.split(key, 12)
    n = lambda k, shape: (0.02 * jax.random.normal(k, shape)).astype(jnp.float32)
    return {
        "tok_emb": n(ks[0], (VOCAB, HIDDEN)),
        "pos_emb": n(ks[1], (SEQ, HIDDEN)),
        "ln0_g": jnp.ones((1, HIDDEN), jnp.float32),
        "ln0_b": jnp.zeros((1, HIDDEN), jnp.float32),
        "wq": n(ks[2], (HIDDEN, HIDDEN)), "bq": jnp.zeros((1, HIDDEN), jnp.float32),
        "wk": n(ks[3], (HIDDEN, HIDDEN)), "bk": jnp.zeros((1, HIDDEN), jnp.float32),
        "wv": n(ks[4], (HIDDEN, HIDDEN)), "bv": jnp.zeros((1, HIDDEN), jnp.float32),
        "wo": n(ks[5], (HIDDEN, HIDDEN)), "bo": jnp.zeros((1, HIDDEN), jnp.float32),
        "ln1_g": jnp.ones((1, HIDDEN), jnp.float32),
        "ln1_b": jnp.zeros((1, HIDDEN), jnp.float32),
        "w1": n(ks[6], (HIDDEN, FFN)), "b1": jnp.zeros((1, FFN), jnp.float32),
        "w2": n(ks[7], (FFN, HIDDEN)), "b2": jnp.zeros((1, HIDDEN), jnp.float32),
        "ln2_g": jnp.ones((1, HIDDEN), jnp.float32),
        "ln2_b": jnp.zeros((1, HIDDEN), jnp.float32),
    }


# ------------------------------- CXTEBD --------------------------------------
class CXTEBD:
    """Embedding layer that returns "precomputed BERT" embeddings."""

    def __init__(self, params, return_seq=False):
        self.params = params
        self.return_seq = return_seq
        self.embedding_dim = HIDDEN
        self.ebd_dim = HIDDEN

    def get_bert(self, bert_id, mask):
        # (B, S, H) if return_seq else (B, H) [CLS] embeddings.
        return encoder_forward(self.params, bert_id, mask,
                               return_seq=self.return_seq)

    def forward(self, data, weight=None, flag=None):
        # torch.no_grad() -> stop_gradient.  text and aug_text are batched into
        # ONE encoder pass (block-diagonal attention keeps examples separate),
        # halving kernel launches and weight DMAs.
        ids = jnp.concatenate([data["text"], data["aug_text"]], axis=0)
        mask = jnp.concatenate([data["attn_mask"], data["aug_mask"]], axis=0)
        out = jax.lax.stop_gradient(self.get_bert(ids, mask))
        b = data["text"].shape[0]
        return out[:b], out[b:]


# --------------------------------- main ---------------------------------------
if __name__ == "__main__":
    key = jax.random.PRNGKey(0)
    k_param, k_txt, k_aug = jax.random.split(key, 3)

    B = 2
    params = init_params(k_param)

    text = jax.random.randint(k_txt, (B, SEQ), 0, VOCAB, dtype=jnp.int32)
    aug_text = jax.random.randint(k_aug, (B, SEQ), 0, VOCAB, dtype=jnp.int32)
    attn_mask = jnp.concatenate(
        [jnp.ones((B, SEQ - 2), jnp.int32), jnp.zeros((B, 2), jnp.int32)], axis=1)
    aug_mask = jnp.ones((B, SEQ), jnp.int32)

    data = {"text": text, "attn_mask": attn_mask,
            "aug_text": aug_text, "aug_mask": aug_mask}

    model = CXTEBD(params, return_seq=False)
    x, x_aug = model.forward(data)
    jax.block_until_ready((x, x_aug))

    assert x.shape == (B, HIDDEN) and x_aug.shape == (B, HIDDEN)
    assert jnp.all(jnp.isfinite(x)) and jnp.all(jnp.isfinite(x_aug))
    print("KERNEL_OK")
</pallas_src>

<mosaic_0001>
module attributes {stable_mosaic.version = 11 : i64} {
  func.func @_encoder_kernel(%arg0: i32, %arg1: memref<32x1xi32, #tpu.memory_space<vmem>>, %arg2: memref<1x32xf32, #tpu.memory_space<vmem>>, %arg3: memref<32x128xf32, #tpu.memory_space<vmem>>, %arg4: memref<8x128xf32, #tpu.memory_space<vmem>>, %arg5: memref<1x128xf32, #tpu.memory_space<vmem>>, %arg6: memref<1x128xf32, #tpu.memory_space<vmem>>, %arg7: memref<128x128xf32, #tpu.memory_space<vmem>>, %arg8: memref<1x128xf32, #tpu.memory_space<vmem>>, %arg9: memref<128x128xf32, #tpu.memory_space<vmem>>, %arg10: memref<1x128xf32, #tpu.memory_space<vmem>>, %arg11: memref<128x128xf32, #tpu.memory_space<vmem>>, %arg12: memref<1x128xf32, #tpu.memory_space<vmem>>, %arg13: memref<128x128xf32, #tpu.memory_space<vmem>>, %arg14: memref<1x128xf32, #tpu.memory_space<vmem>>, %arg15: memref<1x128xf32, #tpu.memory_space<vmem>>, %arg16: memref<1x128xf32, #tpu.memory_space<vmem>>, %arg17: memref<128x512xf32, #tpu.memory_space<vmem>>, %arg18: memref<1x512xf32, #tpu.memory_space<vmem>>, %arg19: memref<512x128xf32, #tpu.memory_space<vmem>>, %arg20: memref<1x128xf32, #tpu.memory_space<vmem>>, %arg21: memref<1x128xf32, #tpu.memory_space<vmem>>, %arg22: memref<1x128xf32, #tpu.memory_space<vmem>>, %arg23: memref<4x128xf32, #tpu.memory_space<vmem>>, %arg24: memref<4x128xf32, #tpu.memory_space<vmem>>) attributes {dimension_semantics = [#tpu.dimension_semantics<arbitrary>], iteration_bounds = array<i64: 1>, scalar_prefetch = 0 : i64, scratch_operands = 1 : i64, tpu.core_type = #tpu.core_type<tc>, window_params = [{pipeline_mode = #tpu.pipeline_mode<synchronous>, transform_indices = @transform_0, window_bounds = array<i64: 32, 1>}, {pipeline_mode = #tpu.pipeline_mode<synchronous>, transform_indices = @transform_1, window_bounds = array<i64: 1, 32>}, {pipeline_mode = #tpu.pipeline_mode<synchronous>, transform_indices = @transform_2, window_bounds = array<i64: 32, 128>}, {pipeline_mode = #tpu.pipeline_mode<synchronous>, transform_indices = @transform_3, window_bounds = array<i64: 8, 128>}, {pipeline_mode = #tpu.pipeline_mode<synchronous>, transform_indices = @transform_4, window_bounds = array<i64: 1, 128>}, {pipeline_mode = #tpu.pipeline_mode<synchronous>, transform_indices = @transform_5, window_bounds = array<i64: 1, 128>}, {pipeline_mode = #tpu.pipeline_mode<synchronous>, transform_indices = @transform_6, window_bounds = array<i64: 128, 128>}, {pipeline_mode = #tpu.pipeline_mode<synchronous>, transform_indices = @transform_7, window_bounds = array<i64: 1, 128>}, {pipeline_mode = #tpu.pipeline_mode<synchronous>, transform_indices = @transform_8, window_bounds = array<i64: 128, 128>}, {pipeline_mode = #tpu.pipeline_mode<synchronous>, transform_indices = @transform_9, window_bounds = array<i64: 1, 128>}, {pipeline_mode = #tpu.pipeline_mode<synchronous>, transform_indices = @transform_10, window_bounds = array<i64: 128, 128>}, {pipeline_mode = #tpu.pipeline_mode<synchronous>, transform_indices = @transform_11, window_bounds = array<i64: 1, 128>}, {pipeline_mode = #tpu.pipeline_mode<synchronous>, transform_indices = @transform_12, window_bounds = array<i64: 128, 128>}, {pipeline_mode = #tpu.pipeline_mode<synchronous>, transform_indices = @transform_13, window_bounds = array<i64: 1, 128>}, {pipeline_mode = #tpu.pipeline_mode<synchronous>, transform_indices = @transform_14, window_bounds = array<i64: 1, 128>}, {pipeline_mode = #tpu.pipeline_mode<synchronous>, transform_indices = @transform_15, window_bounds = array<i64: 1, 128>}, {pipeline_mode = #tpu.pipeline_mode<synchronous>, transform_indices = @transform_16, window_bounds = array<i64: 128, 512>}, {pipeline_mode = #tpu.pipeline_mode<synchronous>, transform_indices = @transform_17, window_bounds = array<i64: 1, 512>}, {pipeline_mode = #tpu.pipeline_mode<synchronous>, transform_indices = @transform_18, window_bounds = array<i64: 512, 128>}, {pipeline_mode = #tpu.pipeline_mode<synchronous>, transform_indices = @transform_19, window_bounds = array<i64: 1, 128>}, {pipeline_mode = #tpu.pipeline_mode<synchronous>, transform_indices = @transform_20, window_bounds = array<i64: 1, 128>}, {pipeline_mode = #tpu.pipeline_mode<synchronous>, transform_indices = @transform_21, window_bounds = array<i64: 1, 128>}, {pipeline_mode = #tpu.pipeline_mode<synchronous>, transform_indices = @transform_22, window_bounds = array<i64: 4, 128>}]} {
    %c0 = arith.constant 0 : index
    %c0_0 = arith.constant 0 : index
    %0 = vector.load %arg1[%c0, %c0_0] : memref<32x1xi32, #tpu.memory_space<vmem>>, vector<32x1xi32>
    %1 = tpu.iota {dimensions = array<i32: 1>} : vector<32x32xi32>
    %2 = vector.broadcast %0 : vector<32x1xi32> to vector<32x32xi32>
    %3 = arith.cmpi eq, %2, %1 : vector<32x32xi32>
    %4 = arith.extui %3 : vector<32x32xi1> to vector<32x32xi32>
    %5 = arith.sitofp %4 : vector<32x32xi32> to vector<32x32xf32>
    %6 = tpu.iota {dimensions = array<i32: 0>} : vector<32x8xi32>
    %c7_i32 = arith.constant 7 : i32
    %7 = vector.broadcast %c7_i32 : i32 to vector<32x8xi32>
    %8 = arith.andi %6, %7 : vector<32x8xi32>
    %9 = tpu.iota {dimensions = array<i32: 1>} : vector<32x8xi32>
    %10 = arith.cmpi eq, %8, %9 : vector<32x8xi32>
    %11 = arith.extui %10 : vector<32x8xi1> to vector<32x8xi32>
    %12 = arith.sitofp %11 : vector<32x8xi32> to vector<32x8xf32>
    %c0_1 = arith.constant 0 : index
    %c0_2 = arith.constant 0 : index
    %13 = vector.load %arg3[%c0_1, %c0_2] : memref<32x128xf32, #tpu.memory_space<vmem>>, vector<32x128xf32>
    %cst = arith.constant dense<0.000000e+00> : vector<32x128xf32>
    %14 = tpu.matmul %5, %13, %cst {dimension_numbers = #tpu.dot_dimension_numbers<[1], [0], [0], [1], [0, 0, 1, 1], [], []>} : vector<32x32xf32>, vector<32x128xf32>, vector<32x128xf32> -> vector<32x128xf32>
    %c0_3 = arith.constant 0 : index
    %c0_4 = arith.constant 0 : index
    %15 = vector.load %arg4[%c0_3, %c0_4] : memref<8x128xf32, #tpu.memory_space<vmem>>, vector<8x128xf32>
    %cst_5 = arith.constant dense<0.000000e+00> : vector<32x128xf32>
    %16 = tpu.matmul %12, %15, %cst_5 {dimension_numbers = #tpu.dot_dimension_numbers<[1], [0], [0], [1], [0, 0, 1, 1], [], []>} : vector<32x8xf32>, vector<8x128xf32>, vector<32x128xf32> -> vector<32x128xf32>
    %17 = arith.addf %14, %16 : vector<32x128xf32>
    %c0_6 = arith.constant 0 : index
    %c0_7 = arith.constant 0 : index
    %18 = vector.load %arg5[%c0_6, %c0_7] : memref<1x128xf32, #tpu.memory_space<vmem>>, vector<1x128xf32>
    %c0_8 = arith.constant 0 : index
    %c0_9 = arith.constant 0 : index
    %19 = vector.load %arg6[%c0_8, %c0_9] : memref<1x128xf32, #tpu.memory_space<vmem>>, vector<1x128xf32>
    %cst_10 = arith.constant dense<0.000000e+00> : vector<32xf32>
    %20 = vector.multi_reduction <add>, %17, %cst_10 [1] : vector<32x128xf32> to vector<32xf32>
    %21 = vector.shape_cast %20 : vector<32xf32> to vector<32x1xf32>
    %cst_11 = arith.constant 1.280000e+02 : f32
    %22 = vector.broadcast %cst_11 : f32 to vector<32x1xf32>
    %23 = arith.divf %21, %22 : vector<32x1xf32>
    %24 = vector.broadcast %23 : vector<32x1xf32> to vector<32x128xf32>
    %25 = arith.subf %17, %24 : vector<32x128xf32>
    %26 = arith.mulf %25, %25 : vector<32x128xf32>
    %cst_12 = arith.constant dense<0.000000e+00> : vector<32xf32>
    %27 = vector.multi_reduction <add>, %26, %cst_12 [1] : vector<32x128xf32> to vector<32xf32>
    %28 = vector.shape_cast %27 : vector<32xf32> to vector<32x1xf32>
    %cst_13 = arith.constant 1.280000e+02 : f32
    %29 = vector.broadcast %cst_13 : f32 to vector<32x1xf32>
    %30 = arith.divf %28, %29 : vector<32x1xf32>
    %31 = vector.broadcast %23 : vector<32x1xf32> to vector<32x128xf32>
    %32 = arith.subf %17, %31 : vector<32x128xf32>
    %cst_14 = arith.constant 9.99999996E-13 : f32
    %33 = vector.broadcast %cst_14 : f32 to vector<32x1xf32>
    %34 = arith.addf %30, %33 : vector<32x1xf32>
    %35 = math.rsqrt %34 : vector<32x1xf32>
    %36 = vector.broadcast %35 : vector<32x1xf32> to vector<32x128xf32>
    %37 = arith.mulf %32, %36 : vector<32x128xf32>
    %38 = vector.broadcast %18 : vector<1x128xf32> to vector<32x128xf32>
    %39 = arith.mulf %37, %38 : vector<32x128xf32>
    %40 = vector.broadcast %19 : vector<1x128xf32> to vector<32x128xf32>
    %41 = arith.addf %39, %40 : vector<32x128xf32>
    %42 = tpu.iota {dimensions = array<i32: 1>} : vector<4x32xi32>
    %43 = tpu.iota {dimensions = array<i32: 0>} : vector<4x32xi32>
    %c8_i32 = arith.constant 8 : i32
    %44 = vector.broadcast %c8_i32 : i32 to vector<4x32xi32>
    %45 = arith.muli %43, %44 : vector<4x32xi32>
    %46 = arith.cmpi eq, %42, %45 : vector<4x32xi32>
    %47 = arith.extui %46 : vector<4x32xi1> to vector<4x32xi32>
    %48 = arith.sitofp %47 : vector<4x32xi32> to vector<4x32xf32>
    %cst_15 = arith.constant dense<0.000000e+00> : vector<4x128xf32>
    %49 = tpu.matmul %48, %41, %cst_15 {dimension_numbers = #tpu.dot_dimension_numbers<[1], [0], [0], [1], [0, 0, 1, 1], [], []>} : vector<4x32xf32>, vector<32x128xf32>, vector<4x128xf32> -> vector<4x128xf32>
    %50 = arith.xori %45, %42 : vector<4x32xi32>
    %c8_i32_16 = arith.constant 8 : i32
    %51 = vector.broadcast %c8_i32_16 : i32 to vector<4x32xi32>
    %52 = arith.cmpi slt, %50, %51 : vector<4x32xi32>
    %c0_17 = arith.constant 0 : index
    %c0_18 = arith.constant 0 : index
    %53 = vector.load %arg2[%c0_17, %c0_18] : memref<1x32xf32, #tpu.memory_space<vmem>>, vector<1x32xf32>
    %cst_19 = arith.constant 5.000000e-01 : f32
    %54 = vector.broadcast %cst_19 : f32 to vector<1x32xf32>
    %55 = arith.cmpf ogt, %53, %54 : vector<1x32xf32>
    %56 = vector.broadcast %55 : vector<1x32xi1> to vector<4x32xi1>
    %57 = arith.andi %52, %56 : vector<4x32xi1>
    %cst_20 = arith.constant 0.000000e+00 : f32
    %cst_21 = arith.constant -1.000000e+09 : f32
    %58 = vector.broadcast %cst_20 : f32 to vector<4x32xf32>
    %59 = vector.broadcast %cst_21 : f32 to vector<4x32xf32>
    %60 = arith.select %57, %58, %59 : vector<4x32xi1>, vector<4x32xf32>
    %c0_22 = arith.constant 0 : index
    %c0_23 = arith.constant 0 : index
    %61 = vector.load %arg7[%c0_22, %c0_23] : memref<128x128xf32, #tpu.memory_space<vmem>>, vector<128x128xf32>
    %cst_24 = arith.constant dense<0.000000e+00> : vector<4x128xf32>
    %62 = tpu.matmul %49, %61, %cst_24 {dimension_numbers = #tpu.dot_dimension_numbers<[1], [0], [0], [1], [0, 0, 1, 1], [], []>} : vector<4x128xf32>, vector<128x128xf32>, vector<4x128xf32> -> vector<4x128xf32>
    %c0_25 = arith.constant 0 : index
    %c0_26 = arith.constant 0 : index
    %63 = vector.load %arg8[%c0_25, %c0_26] : memref<1x128xf32, #tpu.memory_space<vmem>>, vector<1x128xf32>
    %64 = vector.broadcast %63 : vector<1x128xf32> to vector<4x128xf32>
    %65 = arith.addf %62, %64 : vector<4x128xf32>
    %c0_27 = arith.constant 0 : index
    %c0_28 = arith.constant 0 : index
    %66 = vector.load %arg9[%c0_27, %c0_28] : memref<128x128xf32, #tpu.memory_space<vmem>>, vector<128x128xf32>
    %cst_29 = arith.constant dense<0.000000e+00> : vector<32x128xf32>
    %67 = tpu.matmul %41, %66, %cst_29 {dimension_numbers = #tpu.dot_dimension_numbers<[1], [0], [0], [1], [0, 0, 1, 1], [], []>} : vector<32x128xf32>, vector<128x128xf32>, vector<32x128xf32> -> vector<32x128xf32>
    %c0_30 = arith.constant 0 : index
    %c0_31 = arith.constant 0 : index
    %68 = vector.load %arg10[%c0_30, %c0_31] : memref<1x128xf32, #tpu.memory_space<vmem>>, vector<1x128xf32>
    %69 = vector.broadcast %68 : vector<1x128xf32> to vector<32x128xf32>
    %70 = arith.addf %67, %69 : vector<32x128xf32>
    %c0_32 = arith.constant 0 : index
    %c0_33 = arith.constant 0 : index
    %71 = vector.load %arg11[%c0_32, %c0_33] : memref<128x128xf32, #tpu.memory_space<vmem>>, vector<128x128xf32>
    %cst_34 = arith.constant dense<0.000000e+00> : vector<32x128xf32>
    %72 = tpu.matmul %41, %71, %cst_34 {dimension_numbers = #tpu.dot_dimension_numbers<[1], [0], [0], [1], [0, 0, 1, 1], [], []>} : vector<32x128xf32>, vector<128x128xf32>, vector<32x128xf32> -> vector<32x128xf32>
    %c0_35 = arith.constant 0 : index
    %c0_36 = arith.constant 0 : index
    %73 = vector.load %arg12[%c0_35, %c0_36] : memref<1x128xf32, #tpu.memory_space<vmem>>, vector<1x128xf32>
    %74 = vector.broadcast %73 : vector<1x128xf32> to vector<32x128xf32>
    %75 = arith.addf %72, %74 : vector<32x128xf32>
    %76 = vector.extract_strided_slice %65 {offsets = [0, 0], sizes = [4, 32], strides = [1, 1]} : vector<4x128xf32> to vector<4x32xf32>
    %77 = vector.extract_strided_slice %70 {offsets = [0, 0], sizes = [32, 32], strides = [1, 1]} : vector<32x128xf32> to vector<32x32xf32>
    %78 = vector.extract_strided_slice %75 {offsets = [0, 0], sizes = [32, 32], strides = [1, 1]} : vector<32x128xf32> to vector<32x32xf32>
    %cst_37 = arith.constant dense<0.000000e+00> : vector<4x32xf32>
    %79 = tpu.matmul %76, %77, %cst_37 {dimension_numbers = #tpu.dot_dimension_numbers<[1], [1], [0], [0], [0, 0, 1, 0], [], []>} : vector<4x32xf32>, vector<32x32xf32>, vector<4x32xf32> -> vector<4x32xf32>
    %cst_38 = arith.constant 0.176776692 : f32
    %80 = vector.broadcast %cst_38 : f32 to vector<4x32xf32>
    %81 = arith.mulf %79, %80 : vector<4x32xf32>
    %82 = arith.addf %81, %60 : vector<4x32xf32>
    %cst_39 = arith.constant dense<0xFF800000> : vector<4xf32>
    %83 = vector.multi_reduction <maximumf>, %82, %cst_39 [1] : vector<4x32xf32> to vector<4xf32>
    %84 = vector.shape_cast %83 : vector<4xf32> to vector<4x1xf32>
    %85 = vector.broadcast %84 : vector<4x1xf32> to vector<4x32xf32>
    %86 = arith.subf %82, %85 : vector<4x32xf32>
    %87 = math.exp %86 : vector<4x32xf32>
    %cst_40 = arith.constant dense<0.000000e+00> : vector<4xf32>
    %88 = vector.multi_reduction <add>, %87, %cst_40 [1] : vector<4x32xf32> to vector<4xf32>
    %89 = vector.shape_cast %88 : vector<4xf32> to vector<4x1xf32>
    %90 = tpu.reciprocal %89 {approx = true} : vector<4x1xf32> -> vector<4x1xf32>
    %91 = vector.broadcast %90 : vector<4x1xf32> to vector<4x32xf32>
    %92 = arith.mulf %87, %91 : vector<4x32xf32>
    %cst_41 = arith.constant dense<0.000000e+00> : vector<4x32xf32>
    %93 = tpu.matmul %92, %78, %cst_41 {dimension_numbers = #tpu.dot_dimension_numbers<[1], [0], [0], [1], [0, 0, 1, 1], [], []>} : vector<4x32xf32>, vector<32x32xf32>, vector<4x32xf32> -> vector<4x32xf32>
    %c0_42 = arith.constant 0 : index
    %c0_43 = arith.constant 0 : index
    %94 = vector.load %arg24[%c0_42, %c0_43] : memref<4x128xf32, #tpu.memory_space<vmem>>, vector<4x32xf32>
    tpu.vector_store %arg24[%c0_42, %c0_43], %93 {strides = array<i32>} : memref<4x128xf32, #tpu.memory_space<vmem>>, vector<4x32xf32>,
    %95 = vector.extract_strided_slice %65 {offsets = [0, 32], sizes = [4, 32], strides = [1, 1]} : vector<4x128xf32> to vector<4x32xf32>
    %96 = vector.extract_strided_slice %70 {offsets = [0, 32], sizes = [32, 32], strides = [1, 1]} : vector<32x128xf32> to vector<32x32xf32>
    %97 = vector.extract_strided_slice %75 {offsets = [0, 32], sizes = [32, 32], strides = [1, 1]} : vector<32x128xf32> to vector<32x32xf32>
    %cst_44 = arith.constant dense<0.000000e+00> : vector<4x32xf32>
    %98 = tpu.matmul %95, %96, %cst_44 {dimension_numbers = #tpu.dot_dimension_numbers<[1], [1], [0], [0], [0, 0, 1, 0], [], []>} : vector<4x32xf32>, vector<32x32xf32>, vector<4x32xf32> -> vector<4x32xf32>
    %cst_45 = arith.constant 0.176776692 : f32
    %99 = vector.broadcast %cst_45 : f32 to vector<4x32xf32>
    %100 = arith.mulf %98, %99 : vector<4x32xf32>
    %101 = arith.addf %100, %60 : vector<4x32xf32>
    %cst_46 = arith.constant dense<0xFF800000> : vector<4xf32>
    %102 = vector.multi_reduction <maximumf>, %101, %cst_46 [1] : vector<4x32xf32> to vector<4xf32>
    %103 = vector.shape_cast %102 : vector<4xf32> to vector<4x1xf32>
    %104 = vector.broadcast %103 : vector<4x1xf32> to vector<4x32xf32>
    %105 = arith.subf %101, %104 : vector<4x32xf32>
    %106 = math.exp %105 : vector<4x32xf32>
    %cst_47 = arith.constant dense<0.000000e+00> : vector<4xf32>
    %107 = vector.multi_reduction <add>, %106, %cst_47 [1] : vector<4x32xf32> to vector<4xf32>
    %108 = vector.shape_cast %107 : vector<4xf32> to vector<4x1xf32>
    %109 = tpu.reciprocal %108 {approx = true} : vector<4x1xf32> -> vector<4x1xf32>
    %110 = vector.broadcast %109 : vector<4x1xf32> to vector<4x32xf32>
    %111 = arith.mulf %106, %110 : vector<4x32xf32>
    %cst_48 = arith.constant dense<0.000000e+00> : vector<4x32xf32>
    %112 = tpu.matmul %111, %97, %cst_48 {dimension_numbers = #tpu.dot_dimension_numbers<[1], [0], [0], [1], [0, 0, 1, 1], [], []>} : vector<4x32xf32>, vector<32x32xf32>, vector<4x32xf32> -> vector<4x32xf32>
    %c0_49 = arith.constant 0 : index
    %c32 = arith.constant 32 : index
    %113 = vector.load %arg24[%c0_49, %c32] : memref<4x128xf32, #tpu.memory_space<vmem>>, vector<4x32xf32>
    tpu.vector_store %arg24[%c0_49, %c32], %112 {strides = array<i32>} : memref<4x128xf32, #tpu.memory_space<vmem>>, vector<4x32xf32>,
    %114 = vector.extract_strided_slice %65 {offsets = [0, 64], sizes = [4, 32], strides = [1, 1]} : vector<4x128xf32> to vector<4x32xf32>
    %115 = vector.extract_strided_slice %70 {offsets = [0, 64], sizes = [32, 32], strides = [1, 1]} : vector<32x128xf32> to vector<32x32xf32>
    %116 = vector.extract_strided_slice %75 {offsets = [0, 64], sizes = [32, 32], strides = [1, 1]} : vector<32x128xf32> to vector<32x32xf32>
    %cst_50 = arith.constant dense<0.000000e+00> : vector<4x32xf32>
    %117 = tpu.matmul %114, %115, %cst_50 {dimension_numbers = #tpu.dot_dimension_numbers<[1], [1], [0], [0], [0, 0, 1, 0], [], []>} : vector<4x32xf32>, vector<32x32xf32>, vector<4x32xf32> -> vector<4x32xf32>
    %cst_51 = arith.constant 0.176776692 : f32
    %118 = vector.broadcast %cst_51 : f32 to vector<4x32xf32>
    %119 = arith.mulf %117, %118 : vector<4x32xf32>
    %120 = arith.addf %119, %60 : vector<4x32xf32>
    %cst_52 = arith.constant dense<0xFF800000> : vector<4xf32>
    %121 = vector.multi_reduction <maximumf>, %120, %cst_52 [1] : vector<4x32xf32> to vector<4xf32>
    %122 = vector.shape_cast %121 : vector<4xf32> to vector<4x1xf32>
    %123 = vector.broadcast %122 : vector<4x1xf32> to vector<4x32xf32>
    %124 = arith.subf %120, %123 : vector<4x32xf32>
    %125 = math.exp %124 : vector<4x32xf32>
    %cst_53 = arith.constant dense<0.000000e+00> : vector<4xf32>
    %126 = vector.multi_reduction <add>, %125, %cst_53 [1] : vector<4x32xf32> to vector<4xf32>
    %127 = vector.shape_cast %126 : vector<4xf32> to vector<4x1xf32>
    %128 = tpu.reciprocal %127 {approx = true} : vector<4x1xf32> -> vector<4x1xf32>
    %129 = vector.broadcast %128 : vector<4x1xf32> to vector<4x32xf32>
    %130 = arith.mulf %125, %129 : vector<4x32xf32>
    %cst_54 = arith.constant dense<0.000000e+00> : vector<4x32xf32>
    %131 = tpu.matmul %130, %116, %cst_54 {dimension_numbers = #tpu.dot_dimension_numbers<[1], [0], [0], [1], [0, 0, 1, 1], [], []>} : vector<4x32xf32>, vector<32x32xf32>, vector<4x32xf32> -> vector<4x32xf32>
    %c0_55 = arith.constant 0 : index
    %c64 = arith.constant 64 : index
    %132 = vector.load %arg24[%c0_55, %c64] : memref<4x128xf32, #tpu.memory_space<vmem>>, vector<4x32xf32>
    tpu.vector_store %arg24[%c0_55, %c64], %131 {strides = array<i32>} : memref<4x128xf32, #tpu.memory_space<vmem>>, vector<4x32xf32>,
    %133 = vector.extract_strided_slice %65 {offsets = [0, 96], sizes = [4, 32], strides = [1, 1]} : vector<4x128xf32> to vector<4x32xf32>
    %134 = vector.extract_strided_slice %70 {offsets = [0, 96], sizes = [32, 32], strides = [1, 1]} : vector<32x128xf32> to vector<32x32xf32>
    %135 = vector.extract_strided_slice %75 {offsets = [0, 96], sizes = [32, 32], strides = [1, 1]} : vector<32x128xf32> to vector<32x32xf32>
    %cst_56 = arith.constant dense<0.000000e+00> : vector<4x32xf32>
    %136 = tpu.matmul %133, %134, %cst_56 {dimension_numbers = #tpu.dot_dimension_numbers<[1], [1], [0], [0], [0, 0, 1, 0], [], []>} : vector<4x32xf32>, vector<32x32xf32>, vector<4x32xf32> -> vector<4x32xf32>
    %cst_57 = arith.constant 0.176776692 : f32
    %137 = vector.broadcast %cst_57 : f32 to vector<4x32xf32>
    %138 = arith.mulf %136, %137 : vector<4x32xf32>
    %139 = arith.addf %138, %60 : vector<4x32xf32>
    %cst_58 = arith.constant dense<0xFF800000> : vector<4xf32>
    %140 = vector.multi_reduction <maximumf>, %139, %cst_58 [1] : vector<4x32xf32> to vector<4xf32>
    %141 = vector.shape_cast %140 : vector<4xf32> to vector<4x1xf32>
    %142 = vector.broadcast %141 : vector<4x1xf32> to vector<4x32xf32>
    %143 = arith.subf %139, %142 : vector<4x32xf32>
    %144 = math.exp %143 : vector<4x32xf32>
    %cst_59 = arith.constant dense<0.000000e+00> : vector<4xf32>
    %145 = vector.multi_reduction <add>, %144, %cst_59 [1] : vector<4x32xf32> to vector<4xf32>
    %146 = vector.shape_cast %145 : vector<4xf32> to vector<4x1xf32>
    %147 = tpu.reciprocal %146 {approx = true} : vector<4x1xf32> -> vector<4x1xf32>
    %148 = vector.broadcast %147 : vector<4x1xf32> to vector<4x32xf32>
    %149 = arith.mulf %144, %148 : vector<4x32xf32>
    %cst_60 = arith.constant dense<0.000000e+00> : vector<4x32xf32>
    %150 = tpu.matmul %149, %135, %cst_60 {dimension_numbers = #tpu.dot_dimension_numbers<[1], [0], [0], [1], [0, 0, 1, 1], [], []>} : vector<4x32xf32>, vector<32x32xf32>, vector<4x32xf32> -> vector<4x32xf32>
    %c0_61 = arith.constant 0 : index
    %c96 = arith.constant 96 : index
    %151 = vector.load %arg24[%c0_61, %c96] : memref<4x128xf32, #tpu.memory_space<vmem>>, vector<4x32xf32>
    tpu.vector_store %arg24[%c0_61, %c96], %150 {strides = array<i32>} : memref<4x128xf32, #tpu.memory_space<vmem>>, vector<4x32xf32>,
    %c0_62 = arith.constant 0 : index
    %c0_63 = arith.constant 0 : index
    %152 = vector.load %arg24[%c0_62, %c0_63] : memref<4x128xf32, #tpu.memory_space<vmem>>, vector<4x128xf32>
    %c0_64 = arith.constant 0 : index
    %c0_65 = arith.constant 0 : index
    %153 = vector.load %arg13[%c0_64, %c0_65] : memref<128x128xf32, #tpu.memory_space<vmem>>, vector<128x128xf32>
    %cst_66 = arith.constant dense<0.000000e+00> : vector<4x128xf32>
    %154 = tpu.matmul %152, %153, %cst_66 {dimension_numbers = #tpu.dot_dimension_numbers<[1], [0], [0], [1], [0, 0, 1, 1], [], []>} : vector<4x128xf32>, vector<128x128xf32>, vector<4x128xf32> -> vector<4x128xf32>
    %c0_67 = arith.constant 0 : index
    %c0_68 = arith.constant 0 : index
    %155 = vector.load %arg14[%c0_67, %c0_68] : memref<1x128xf32, #tpu.memory_space<vmem>>, vector<1x128xf32>
    %156 = vector.broadcast %155 : vector<1x128xf32> to vector<4x128xf32>
    %157 = arith.addf %154, %156 : vector<4x128xf32>
    %158 = arith.addf %49, %157 : vector<4x128xf32>
    %c0_69 = arith.constant 0 : index
    %c0_70 = arith.constant 0 : index
    %159 = vector.load %arg15[%c0_69, %c0_70] : memref<1x128xf32, #tpu.memory_space<vmem>>, vector<1x128xf32>
    %c0_71 = arith.constant 0 : index
    %c0_72 = arith.constant 0 : index
    %160 = vector.load %arg16[%c0_71, %c0_72] : memref<1x128xf32, #tpu.memory_space<vmem>>, vector<1x128xf32>
    %cst_73 = arith.constant dense<0.000000e+00> : vector<4xf32>
    %161 = vector.multi_reduction <add>, %158, %cst_73 [1] : vector<4x128xf32> to vector<4xf32>
    %162 = vector.shape_cast %161 : vector<4xf32> to vector<4x1xf32>
    %cst_74 = arith.constant 1.280000e+02 : f32
    %163 = vector.broadcast %cst_74 : f32 to vector<4x1xf32>
    %164 = arith.divf %162, %163 : vector<4x1xf32>
    %165 = vector.broadcast %164 : vector<4x1xf32> to vector<4x128xf32>
    %166 = arith.subf %158, %165 : vector<4x128xf32>
    %167 = arith.mulf %166, %166 : vector<4x128xf32>
    %cst_75 = arith.constant dense<0.000000e+00> : vector<4xf32>
    %168 = vector.multi_reduction <add>, %167, %cst_75 [1] : vector<4x128xf32> to vector<4xf32>
    %169 = vector.shape_cast %168 : vector<4xf32> to vector<4x1xf32>
    %cst_76 = arith.constant 1.280000e+02 : f32
    %170 = vector.broadcast %cst_76 : f32 to vector<4x1xf32>
    %171 = arith.divf %169, %170 : vector<4x1xf32>
    %172 = vector.broadcast %164 : vector<4x1xf32> to vector<4x128xf32>
    %173 = arith.subf %158, %172 : vector<4x128xf32>
    %cst_77 = arith.constant 9.99999996E-13 : f32
    %174 = vector.broadcast %cst_77 : f32 to vector<4x1xf32>
    %175 = arith.addf %171, %174 : vector<4x1xf32>
    %176 = math.rsqrt %175 : vector<4x1xf32>
    %177 = vector.broadcast %176 : vector<4x1xf32> to vector<4x128xf32>
    %178 = arith.mulf %173, %177 : vector<4x128xf32>
    %179 = vector.broadcast %159 : vector<1x128xf32> to vector<4x128xf32>
    %180 = arith.mulf %178, %179 : vector<4x128xf32>
    %181 = vector.broadcast %160 : vector<1x128xf32> to vector<4x128xf32>
    %182 = arith.addf %180, %181 : vector<4x128xf32>
    %c0_78 = arith.constant 0 : index
    %c0_79 = arith.constant 0 : index
    %183 = vector.load %arg17[%c0_78, %c0_79] : memref<128x512xf32, #tpu.memory_space<vmem>>, vector<128x512xf32>
    %cst_80 = arith.constant dense<0.000000e+00> : vector<4x512xf32>
    %184 = tpu.matmul %182, %183, %cst_80 {dimension_numbers = #tpu.dot_dimension_numbers<[1], [0], [0], [1], [0, 0, 1, 1], [], []>} : vector<4x128xf32>, vector<128x512xf32>, vector<4x512xf32> -> vector<4x512xf32>
    %c0_81 = arith.constant 0 : index
    %c0_82 = arith.constant 0 : index
    %185 = vector.load %arg18[%c0_81, %c0_82] : memref<1x512xf32, #tpu.memory_space<vmem>>, vector<1x512xf32>
    %186 = vector.broadcast %185 : vector<1x512xf32> to vector<4x512xf32>
    %187 = arith.addf %184, %186 : vector<4x512xf32>
    %188 = arith.mulf %187, %187 : vector<4x512xf32>
    %189 = arith.mulf %187, %188 : vector<4x512xf32>
    %cst_83 = arith.constant 4.471500e-02 : f32
    %190 = vector.broadcast %cst_83 : f32 to vector<4x512xf32>
    %191 = arith.mulf %190, %189 : vector<4x512xf32>
    %192 = arith.addf %187, %191 : vector<4x512xf32>
    %cst_84 = arith.constant 0.797884583 : f32
    %193 = vector.broadcast %cst_84 : f32 to vector<4x512xf32>
    %194 = arith.mulf %193, %192 : vector<4x512xf32>
    %195 = math.tanh %194 : vector<4x512xf32>
    %cst_85 = arith.constant 1.000000e+00 : f32
    %196 = vector.broadcast %cst_85 : f32 to vector<4x512xf32>
    %197 = arith.addf %196, %195 : vector<4x512xf32>
    %cst_86 = arith.constant 5.000000e-01 : f32
    %198 = vector.broadcast %cst_86 : f32 to vector<4x512xf32>
    %199 = arith.mulf %198, %197 : vector<4x512xf32>
    %200 = arith.mulf %187, %199 : vector<4x512xf32>
    %c0_87 = arith.constant 0 : index
    %c0_88 = arith.constant 0 : index
    %201 = vector.load %arg19[%c0_87, %c0_88] : memref<512x128xf32, #tpu.memory_space<vmem>>, vector<512x128xf32>
    %cst_89 = arith.constant dense<0.000000e+00> : vector<4x128xf32>
    %202 = tpu.matmul %200, %201, %cst_89 {dimension_numbers = #tpu.dot_dimension_numbers<[1], [0], [0], [1], [0, 0, 1, 1], [], []>} : vector<4x512xf32>, vector<512x128xf32>, vector<4x128xf32> -> vector<4x128xf32>
    %c0_90 = arith.constant 0 : index
    %c0_91 = arith.constant 0 : index
    %203 = vector.load %arg20[%c0_90, %c0_91] : memref<1x128xf32, #tpu.memory_space<vmem>>, vector<1x128xf32>
    %204 = vector.broadcast %203 : vector<1x128xf32> to vector<4x128xf32>
    %205 = arith.addf %202, %204 : vector<4x128xf32>
    %206 = arith.addf %182, %205 : vector<4x128xf32>
    %c0_92 = arith.constant 0 : index
    %c0_93 = arith.constant 0 : index
    %207 = vector.load %arg21[%c0_92, %c0_93] : memref<1x128xf32, #tpu.memory_space<vmem>>, vector<1x128xf32>
    %c0_94 = arith.constant 0 : index
    %c0_95 = arith.constant 0 : index
    %208 = vector.load %arg22[%c0_94, %c0_95] : memref<1x128xf32, #tpu.memory_space<vmem>>, vector<1x128xf32>
    %cst_96 = arith.constant dense<0.000000e+00> : vector<4xf32>
    %209 = vector.multi_reduction <add>, %206, %cst_96 [1] : vector<4x128xf32> to vector<4xf32>
    %210 = vector.shape_cast %209 : vector<4xf32> to vector<4x1xf32>
    %cst_97 = arith.constant 1.280000e+02 : f32
    %211 = vector.broadcast %cst_97 : f32 to vector<4x1xf32>
    %212 = arith.divf %210, %211 : vector<4x1xf32>
    %213 = vector.broadcast %212 : vector<4x1xf32> to vector<4x128xf32>
    %214 = arith.subf %206, %213 : vector<4x128xf32>
    %215 = arith.mulf %214, %214 : vector<4x128xf32>
    %cst_98 = arith.constant dense<0.000000e+00> : vector<4xf32>
    %216 = vector.multi_reduction <add>, %215, %cst_98 [1] : vector<4x128xf32> to vector<4xf32>
    %217 = vector.shape_cast %216 : vector<4xf32> to vector<4x1xf32>
    %cst_99 = arith.constant 1.280000e+02 : f32
    %218 = vector.broadcast %cst_99 : f32 to vector<4x1xf32>
    %219 = arith.divf %217, %218 : vector<4x1xf32>
    %220 = vector.broadcast %212 : vector<4x1xf32> to vector<4x128xf32>
    %221 = arith.subf %206, %220 : vector<4x128xf32>
    %cst_100 = arith.constant 9.99999996E-13 : f32
    %222 = vector.broadcast %cst_100 : f32 to vector<4x1xf32>
    %223 = arith.addf %219, %222 : vector<4x1xf32>
    %224 = math.rsqrt %223 : vector<4x1xf32>
    %225 = vector.broadcast %224 : vector<4x1xf32> to vector<4x128xf32>
    %226 = arith.mulf %221, %225 : vector<4x128xf32>
    %227 = vector.broadcast %207 : vector<1x128xf32> to vector<4x128xf32>
    %228 = arith.mulf %226, %227 : vector<4x128xf32>
    %229 = vector.broadcast %208 : vector<1x128xf32> to vector<4x128xf32>
    %230 = arith.addf %228, %229 : vector<4x128xf32>
    %c0_101 = arith.constant 0 : index
    %c0_102 = arith.constant 0 : index
    %231 = vector.load %arg23[%c0_101, %c0_102] : memref<4x128xf32, #tpu.memory_space<vmem>>, vector<4x128xf32>
    tpu.vector_store %arg23[%c0_101, %c0_102], %230 {strides = array<i32>} : memref<4x128xf32, #tpu.memory_space<vmem>>, vector<4x128xf32>,
    return
  }
  func.func @transform_0(%arg0: i32) -> (i32, i32) {
    %c0_i32 = arith.constant 0 : i32
    %c0_i32_0 = arith.constant 0 : i32
    %c0_i32_1 = arith.constant 0 : i32
    return %c0_i32, %c0_i32_0 : i32, i32
  }
  func.func @transform_1(%arg0: i32) -> (i32, i32) {
    %c0_i32 = arith.constant 0 : i32
    %c0_i32_0 = arith.constant 0 : i32
    %c0_i32_1 = arith.constant 0 : i32
    return %c0_i32, %c0_i32_0 : i32, i32
  }
  func.func @transform_2(%arg0: i32) -> (i32, i32) {
    %c0_i32 = arith.constant 0 : i32
    %c0_i32_0 = arith.constant 0 : i32
    %c0_i32_1 = arith.constant 0 : i32
    return %c0_i32, %c0_i32_0 : i32, i32
  }
  func.func @transform_3(%arg0: i32) -> (i32, i32) {
    %c0_i32 = arith.constant 0 : i32
    %c0_i32_0 = arith.constant 0 : i32
    %c0_i32_1 = arith.constant 0 : i32
    return %c0_i32, %c0_i32_0 : i32, i32
  }
  func.func @transform_4(%arg0: i32) -> (i32, i32) {
    %c0_i32 = arith.constant 0 : i32
    %c0_i32_0 = arith.constant 0 : i32
    %c0_i32_1 = arith.constant 0 : i32
    return %c0_i32, %c0_i32_0 : i32, i32
  }
  func.func @transform_5(%arg0: i32) -> (i32, i32) {
    %c0_i32 = arith.constant 0 : i32
    %c0_i32_0 = arith.constant 0 : i32
    %c0_i32_1 = arith.constant 0 : i32
    return %c0_i32, %c0_i32_0 : i32, i32
  }
  func.func @transform_6(%arg0: i32) -> (i32, i32) {
    %c0_i32 = arith.constant 0 : i32
    %c0_i32_0 = arith.constant 0 : i32
    %c0_i32_1 = arith.constant 0 : i32
    return %c0_i32, %c0_i32_0 : i32, i32
  }
  func.func @transform_7(%arg0: i32) -> (i32, i32) {
    %c0_i32 = arith.constant 0 : i32
    %c0_i32_0 = arith.constant 0 : i32
    %c0_i32_1 = arith.constant 0 : i32
    return %c0_i32, %c0_i32_0 : i32, i32
  }
  func.func @transform_8(%arg0: i32) -> (i32, i32) {
    %c0_i32 = arith.constant 0 : i32
    %c0_i32_0 = arith.constant 0 : i32
    %c0_i32_1 = arith.constant 0 : i32
    return %c0_i32, %c0_i32_0 : i32, i32
  }
  func.func @transform_9(%arg0: i32) -> (i32, i32) {
    %c0_i32 = arith.constant 0 : i32
    %c0_i32_0 = arith.constant 0 : i32
    %c0_i32_1 = arith.constant 0 : i32
    return %c0_i32, %c0_i32_0 : i32, i32
  }
  func.func @transform_10(%arg0: i32) -> (i32, i32) {
    %c0_i32 = arith.constant 0 : i32
    %c0_i32_0 = arith.constant 0 : i32
    %c0_i32_1 = arith.constant 0 : i32
    return %c0_i32, %c0_i32_0 : i32, i32
  }
  func.func @transform_11(%arg0: i32) -> (i32, i32) {
    %c0_i32 = arith.constant 0 : i32
    %c0_i32_0 = arith.constant 0 : i32
    %c0_i32_1 = arith.constant 0 : i32
    return %c0_i32, %c0_i32_0 : i32, i32
  }
  func.func @transform_12(%arg0: i32) -> (i32, i32) {
    %c0_i32 = arith.constant 0 : i32
    %c0_i32_0 = arith.constant 0 : i32
    %c0_i32_1 = arith.constant 0 : i32
    return %c0_i32, %c0_i32_0 : i32, i32
  }
  func.func @transform_13(%arg0: i32) -> (i32, i32) {
    %c0_i32 = arith.constant 0 : i32
    %c0_i32_0 = arith.constant 0 : i32
    %c0_i32_1 = arith.constant 0 : i32
    return %c0_i32, %c0_i32_0 : i32, i32
  }
  func.func @transform_14(%arg0: i32) -> (i32, i32) {
    %c0_i32 = arith.constant 0 : i32
    %c0_i32_0 = arith.constant 0 : i32
    %c0_i32_1 = arith.constant 0 : i32
    return %c0_i32, %c0_i32_0 : i32, i32
  }
  func.func @transform_15(%arg0: i32) -> (i32, i32) {
    %c0_i32 = arith.constant 0 : i32
    %c0_i32_0 = arith.constant 0 : i32
    %c0_i32_1 = arith.constant 0 : i32
    return %c0_i32, %c0_i32_0 : i32, i32
  }
  func.func @transform_16(%arg0: i32) -> (i32, i32) {
    %c0_i32 = arith.constant 0 : i32
    %c0_i32_0 = arith.constant 0 : i32
    %c0_i32_1 = arith.constant 0 : i32
    return %c0_i32, %c0_i32_0 : i32, i32
  }
  func.func @transform_17(%arg0: i32) -> (i32, i32) {
    %c0_i32 = arith.constant 0 : i32
    %c0_i32_0 = arith.constant 0 : i32
    %c0_i32_1 = arith.constant 0 : i32
    return %c0_i32, %c0_i32_0 : i32, i32
  }
  func.func @transform_18(%arg0: i32) -> (i32, i32) {
    %c0_i32 = arith.constant 0 : i32
    %c0_i32_0 = arith.constant 0 : i32
    %c0_i32_1 = arith.constant 0 : i32
    return %c0_i32, %c0_i32_0 : i32, i32
  }
  func.func @transform_19(%arg0: i32) -> (i32, i32) {
    %c0_i32 = arith.constant 0 : i32
    %c0_i32_0 = arith.constant 0 : i32
    %c0_i32_1 = arith.constant 0 : i32
    return %c0_i32, %c0_i32_0 : i32, i32
  }
  func.func @transform_20(%arg0: i32) -> (i32, i32) {
    %c0_i32 = arith.constant 0 : i32
    %c0_i32_0 = arith.constant 0 : i32
    %c0_i32_1 = arith.constant 0 : i32
    return %c0_i32, %c0_i32_0 : i32, i32
  }
  func.func @transform_21(%arg0: i32) -> (i32, i32) {
    %c0_i32 = arith.constant 0 : i32
    %c0_i32_0 = arith.constant 0 : i32
    %c0_i32_1 = arith.constant 0 : i32
    return %c0_i32, %c0_i32_0 : i32, i32
  }
  func.func @transform_22(%arg0: i32) -> (i32, i32) {
    %c0_i32 = arith.constant 0 : i32
    %c0_i32_0 = arith.constant 0 : i32
    %c0_i32_1 = arith.constant 0 : i32
    return %c0_i32, %c0_i32_0 : i32, i32
  }
}

</mosaic_0001>

<llo_original>
// kernel: tpu_custom_call.1
$region0: #{tpu_custom_call.1}
  #allocation0 [shape = 'u32[]', space=smem, size = 0x4, offset = 0x4, fixed_abs, tag = 'smem constant byte address 0x4 - core index']
  #allocation1 [shape = 'u32[144,128]{1,0:T(1,128)}', space=vmem, size = 0x12000, scoped, tag = 'internal scratch']
  #allocation2 [shape = 'f32[4,128]{1,0:T(4,128)}', space=vmem, size = 0x800, scoped, tag = 'scratch operand']
  %s0 = inlined_call_operand.vmem [shape: s32[32,1], index: 0, kind: input, shape index: {}]
  %s1 = inlined_call_operand.hbm [shape: f32[1,32], index: 1, kind: input, shape index: {}]
  %s2 = inlined_call_operand.vmem [shape: f32[32,128], index: 2, kind: input, shape index: {}]
  %s3 = inlined_call_operand.vmem [shape: f32[8,128], index: 3, kind: input, shape index: {}]
  %s4 = inlined_call_operand.vmem [shape: f32[1,128], index: 4, kind: input, shape index: {}]
  %s5 = inlined_call_operand.vmem [shape: f32[1,128], index: 5, kind: input, shape index: {}]
  %s6 = inlined_call_operand.hbm [shape: f32[128,128], index: 6, kind: input, shape index: {}]
  %s7 = inlined_call_operand.vmem [shape: f32[1,128], index: 7, kind: input, shape index: {}]
  %s8 = inlined_call_operand.hbm [shape: f32[128,128], index: 8, kind: input, shape index: {}]
  %s9 = inlined_call_operand.vmem [shape: f32[1,128], index: 9, kind: input, shape index: {}]
  %s10 = inlined_call_operand.hbm [shape: f32[128,128], index: 10, kind: input, shape index: {}]
  %s11 = inlined_call_operand.vmem [shape: f32[1,128], index: 11, kind: input, shape index: {}]
  %s12 = inlined_call_operand.hbm [shape: f32[128,128], index: 12, kind: input, shape index: {}]
  %s13 = inlined_call_operand.vmem [shape: f32[1,128], index: 13, kind: input, shape index: {}]
  %s14 = inlined_call_operand.vmem [shape: f32[1,128], index: 14, kind: input, shape index: {}]
  %s15 = inlined_call_operand.vmem [shape: f32[1,128], index: 15, kind: input, shape index: {}]
  %s16 = inlined_call_operand.hbm [shape: f32[128,512], index: 16, kind: input, shape index: {}]
  %s17 = inlined_call_operand.vmem [shape: f32[1,512], index: 17, kind: input, shape index: {}]
  %s18 = inlined_call_operand.hbm [shape: f32[512,128], index: 18, kind: input, shape index: {}]
  %s19 = inlined_call_operand.vmem [shape: f32[1,128], index: 19, kind: input, shape index: {}]
  %s20 = inlined_call_operand.vmem [shape: f32[1,128], index: 20, kind: input, shape index: {}]
  %s21 = inlined_call_operand.vmem [shape: f32[1,128], index: 21, kind: input, shape index: {}]
  %s22 = inlined_call_operand.hbm [shape: f32[4,128], index: 22, kind: output, shape index: {}]
  %s23 = sld [smem:[#allocation0]]
  $region126: #{tpu_custom_call.1} parent=0
    _
  %s25 = ssub.s32 1, %s23
  %s26 = scalar_select 0, %s25, %s23
  $region1: #{tpu_custom_call.1} parent=0
    #allocation3 [shape = 'u8[512]{0}', space=vmem, size = 0x400, scoped, tag = 'input window, operand 1, single buffered']
    #allocation4 [shape = 's32[1]{0}', space=sflag, size = 0x4, scoped, tag = 'scoped memory for tpu_custom_call.1']
    #allocation5 [shape = 's32[1]{0}', space=sflag, size = 0x4, scoped, tag = 'scoped memory for tpu_custom_call.1']
    #allocation6 [shape = 'u8[65536]{0}', space=vmem, size = 0x10000, scoped, tag = 'input window, operand 6, single buffered']
    #allocation7 [shape = 's32[1]{0}', space=sflag, size = 0x4, scoped, tag = 'scoped memory for tpu_custom_call.1']
    #allocation8 [shape = 'u8[65536]{0}', space=vmem, size = 0x10000, scoped, tag = 'input window, operand 8, single buffered']
    #allocation9 [shape = 'u8[65536]{0}', space=vmem, size = 0x10000, scoped, tag = 'input window, operand 10, single buffered']
    #allocation10 [shape = 's32[1]{0}', space=sflag, size = 0x4, scoped, tag = 'scoped memory for tpu_custom_call.1']
    #allocation11 [shape = 'u8[65536]{0}', space=vmem, size = 0x10000, scoped, tag = 'input window, operand 12, single buffered']
    #allocation12 [shape = 'u8[262144]{0}', space=vmem, size = 0x40000, scoped, tag = 'input window, operand 16, single buffered']
    #allocation13 [shape = 's32[1]{0}', space=sflag, size = 0x4, scoped, tag = 'scoped memory for tpu_custom_call.1']
    #allocation14 [shape = 'u8[262144]{0}', space=vmem, size = 0x40000, scoped, tag = 'input window, operand 18, single buffered']
    #allocation15 [shape = 'u8[2048]{0}', space=vmem, size = 0x800, scoped, tag = 'output window, operand 0, single buffered']
    %27 = vsyncpa [#allocation4], 0
    %28 = vsyncpa [#allocation7], 0
    %29 = vsyncpa [#allocation10], 0
    %30 = vsyncpa [#allocation13], 0
    %31 = vsyncpa [#allocation5], 0
    // Predicated region
    $region2: #{tpu_custom_call.1} parent=1 // pred_check
      _
    $region3: #{tpu_custom_call.1} parent=1 // pred_check_branch
      %33 = sbr.rel (0) target = $region5
    $region4: #{tpu_custom_call.1} parent=1 // pred_region
      _
    $region5: #{tpu_custom_call.1} parent=1 // pred_fallthru
      _
    // Predicated region
    $region6: #{tpu_custom_call.1} parent=1 // pred_check
      _
    $region7: #{tpu_custom_call.1} parent=1 // pred_check_branch
      %35 = sbr.rel (0) target = $region9
    $region8: #{tpu_custom_call.1} parent=1 // pred_region
      %s37 = ssub.s32 16, 16
      %38 = vsyncadd [#allocation4], %s37
      %s40 = sshll.u32 [#allocation3], 4
      %s41 = int_to_ptr.vmem [resolvable:$true] %s40
      %43 = dma.hbm_to_vmem [thread:$0]  %s1, 16, %s41, [#allocation4]
    $region9: #{tpu_custom_call.1} parent=1 // pred_fallthru
      _
    // Predicated region
    $region10: #{tpu_custom_call.1} parent=1 // pred_check
      _
    $region11: #{tpu_custom_call.1} parent=1 // pred_check_branch
      %45 = sbr.rel (0) target = $region13
    $region12: #{tpu_custom_call.1} parent=1 // pred_region
      _
    $region13: #{tpu_custom_call.1} parent=1 // pred_fallthru
      _
    // Predicated region
    $region14: #{tpu_custom_call.1} parent=1 // pred_check
      _
    $region15: #{tpu_custom_call.1} parent=1 // pred_check_branch
      %47 = sbr.rel (0) target = $region17
    $region16: #{tpu_custom_call.1} parent=1 // pred_region
      _
    $region17: #{tpu_custom_call.1} parent=1 // pred_fallthru
      _
    // Predicated region
    $region18: #{tpu_custom_call.1} parent=1 // pred_check
      _
    $region19: #{tpu_custom_call.1} parent=1 // pred_check_branch
      %49 = sbr.rel (0) target = $region21
    $region20: #{tpu_custom_call.1} parent=1 // pred_region
      _
    $region21: #{tpu_custom_call.1} parent=1 // pred_fallthru
      _
    // Predicated region
    $region22: #{tpu_custom_call.1} parent=1 // pred_check
      _
    $region23: #{tpu_custom_call.1} parent=1 // pred_check_branch
      %51 = sbr.rel (0) target = $region25
    $region24: #{tpu_custom_call.1} parent=1 // pred_region
      _
    $region25: #{tpu_custom_call.1} parent=1 // pred_fallthru
      _
    // Predicated region
    $region26: #{tpu_custom_call.1} parent=1 // pred_check
      _
    $region27: #{tpu_custom_call.1} parent=1 // pred_check_branch
      %53 = sbr.rel (0) target = $region29
    $region28: #{tpu_custom_call.1} parent=1 // pred_region
      %s55 = ssub.s32 2048, 2048
      %56 = vsyncadd [#allocation7], %s55
      %s57 = sshll.u32 [#allocation6], 4
      %s58 = int_to_ptr.vmem [resolvable:$true] %s57
      %63 = dma.hbm_to_vmem [thread:$0]  %s6, 2048, %s58, [#allocation7], 128, 128, 8
    $region29: #{tpu_custom_call.1} parent=1 // pred_fallthru
      _
    // Predicated region
    $region30: #{tpu_custom_call.1} parent=1 // pred_check
      _
    $region31: #{tpu_custom_call.1} parent=1 // pred_check_branch
      %65 = sbr.rel (0) target = $region33
    $region32: #{tpu_custom_call.1} parent=1 // pred_region
      _
    $region33: #{tpu_custom_call.1} parent=1 // pred_fallthru
      _
    // Predicated region
    $region34: #{tpu_custom_call.1} parent=1 // pred_check
      _
    $region35: #{tpu_custom_call.1} parent=1 // pred_check_branch
      %67 = sbr.rel (0) target = $region37
    $region36: #{tpu_custom_call.1} parent=1 // pred_region
      %s69 = ssub.s32 2048, 2048
      %70 = vsyncadd [#allocation7], %s69
      %s71 = sshll.u32 [#allocation8], 4
      %s72 = int_to_ptr.vmem [resolvable:$true] %s71
      %77 = dma.hbm_to_vmem [thread:$0]  %s8, 2048, %s72, [#allocation7], 128, 128, 8
    $region37: #{tpu_custom_call.1} parent=1 // pred_fallthru
      _
    // Predicated region
    $region38: #{tpu_custom_call.1} parent=1 // pred_check
      _
    $region39: #{tpu_custom_call.1} parent=1 // pred_check_branch
      %79 = sbr.rel (0) target = $region41
    $region40: #{tpu_custom_call.1} parent=1 // pred_region
      _
    $region41: #{tpu_custom_call.1} parent=1 // pred_fallthru
      _
    // Predicated region
    $region42: #{tpu_custom_call.1} parent=1 // pred_check
      _
    $region43: #{tpu_custom_call.1} parent=1 // pred_check_branch
      %81 = sbr.rel (0) target = $region45
    $region44: #{tpu_custom_call.1} parent=1 // pred_region
      %s83 = ssub.s32 2048, 2048
      %84 = vsyncadd [#allocation10], %s83
      %s85 = sshll.u32 [#allocation9], 4
      %s86 = int_to_ptr.vmem [resolvable:$true] %s85
      %91 = dma.hbm_to_vmem [thread:$0]  %s10, 2048, %s86, [#allocation10], 128, 128, 8
    $region45: #{tpu_custom_call.1} parent=1 // pred_fallthru
      _
    // Predicated region
    $region46: #{tpu_custom_call.1} parent=1 // pred_check
      _
    $region47: #{tpu_custom_call.1} parent=1 // pred_check_branch
      %93 = sbr.rel (0) target = $region49
    $region48: #{tpu_custom_call.1} parent=1 // pred_region
      _
    $region49: #{tpu_custom_call.1} parent=1 // pred_fallthru
      _
    // Predicated region
    $region50: #{tpu_custom_call.1} parent=1 // pred_check
      _
    $region51: #{tpu_custom_call.1} parent=1 // pred_check_branch
      %95 = sbr.rel (0) target = $region53
    $region52: #{tpu_custom_call.1} parent=1 // pred_region
      %s97 = ssub.s32 2048, 2048
      %98 = vsyncadd [#allocation10], %s97
      %s99 = sshll.u32 [#allocation11], 4
      %s100 = int_to_ptr.vmem [resolvable:$true] %s99
      %105 = dma.hbm_to_vmem [thread:$0]  %s12, 2048, %s100, [#allocation10], 128, 128, 8
    $region53: #{tpu_custom_call.1} parent=1 // pred_fallthru
      _
    // Predicated region
    $region54: #{tpu_custom_call.1} parent=1 // pred_check
      _
    $region55: #{tpu_custom_call.1} parent=1 // pred_check_branch
      %107 = sbr.rel (0) target = $region57
    $region56: #{tpu_custom_call.1} parent=1 // pred_region
      _
    $region57: #{tpu_custom_call.1} parent=1 // pred_fallthru
      _
    // Predicated region
    $region58: #{tpu_custom_call.1} parent=1 // pred_check
      _
    $region59: #{tpu_custom_call.1} parent=1 // pred_check_branch
      %109 = sbr.rel (0) target = $region61
    $region60: #{tpu_custom_call.1} parent=1 // pred_region
      _
    $region61: #{tpu_custom_call.1} parent=1 // pred_fallthru
      _
    // Predicated region
    $region62: #{tpu_custom_call.1} parent=1 // pred_check
      _
    $region63: #{tpu_custom_call.1} parent=1 // pred_check_branch
      %111 = sbr.rel (0) target = $region65
    $region64: #{tpu_custom_call.1} parent=1 // pred_region
      _
    $region65: #{tpu_custom_call.1} parent=1 // pred_fallthru
      _
    // Predicated region
    $region66: #{tpu_custom_call.1} parent=1 // pred_check
      _
    $region67: #{tpu_custom_call.1} parent=1 // pred_check_branch
      %113 = sbr.rel (0) target = $region69
    $region68: #{tpu_custom_call.1} parent=1 // pred_region
      %s115 = ssub.s32 8192, 8192
      %116 = vsyncadd [#allocation13], %s115
      %s117 = sshll.u32 [#allocation12], 4
      %s118 = int_to_ptr.vmem [resolvable:$true] %s117
      %123 = dma.hbm_to_vmem [thread:$0]  %s16, 8192, %s118, [#allocation13], 512, 512, 32
    $region69: #{tpu_custom_call.1} parent=1 // pred_fallthru
      _
    // Predicated region
    $region70: #{tpu_custom_call.1} parent=1 // pred_check
      _
    $region71: #{tpu_custom_call.1} parent=1 // pred_check_branch
      %125 = sbr.rel (0) target = $region73
    $region72: #{tpu_custom_call.1} parent=1 // pred_region
      _
    $region73: #{tpu_custom_call.1} parent=1 // pred_fallthru
      _
    // Predicated region
    $region74: #{tpu_custom_call.1} parent=1 // pred_check
      _
    $region75: #{tpu_custom_call.1} parent=1 // pred_check_branch
      %127 = sbr.rel (0) target = $region77
    $region76: #{tpu_custom_call.1} parent=1 // pred_region
      %s129 = ssub.s32 8192, 8192
      %130 = vsyncadd [#allocation13], %s129
      %s131 = sshll.u32 [#allocation14], 4
      %s132 = int_to_ptr.vmem [resolvable:$true] %s131
      %137 = dma.hbm_to_vmem [thread:$0]  %s18, 8192, %s132, [#allocation13], 128, 128, 8
    $region77: #{tpu_custom_call.1} parent=1 // pred_fallthru
      _
    // Predicated region
    $region78: #{tpu_custom_call.1} parent=1 // pred_check
      _
    $region79: #{tpu_custom_call.1} parent=1 // pred_check_branch
      %139 = sbr.rel (0) target = $region81
    $region80: #{tpu_custom_call.1} parent=1 // pred_region
      _
    $region81: #{tpu_custom_call.1} parent=1 // pred_fallthru
      _
    // Predicated region
    $region82: #{tpu_custom_call.1} parent=1 // pred_check
      _
    $region83: #{tpu_custom_call.1} parent=1 // pred_check_branch
      %141 = sbr.rel (0) target = $region85
    $region84: #{tpu_custom_call.1} parent=1 // pred_region
      _
    $region85: #{tpu_custom_call.1} parent=1 // pred_fallthru
      _
    // Predicated region
    $region86: #{tpu_custom_call.1} parent=1 // pred_check
      _
    $region87: #{tpu_custom_call.1} parent=1 // pred_check_branch
      %143 = sbr.rel (0) target = $region89
    $region88: #{tpu_custom_call.1} parent=1 // pred_region
      _
    $region89: #{tpu_custom_call.1} parent=1 // pred_fallthru
      _
    // Predicated region
    $region90: #{tpu_custom_call.1} parent=1 // pred_check
      _
    $region91: #{tpu_custom_call.1} parent=1 // pred_check_branch
      %145 = sbr.rel (0) target = $region93
    $region92: #{tpu_custom_call.1} parent=1 // pred_region
      %146 = dma.done [#allocation4], 16
    $region93: #{tpu_custom_call.1} parent=1 // pred_fallthru
      _
    // Predicated region
    $region94: #{tpu_custom_call.1} parent=1 // pred_check
      _
    $region95: #{tpu_custom_call.1} parent=1 // pred_check_branch
      %148 = sbr.rel (0) target = $region97
    $region96: #{tpu_custom_call.1} parent=1 // pred_region
      %149 = dma.done [#allocation7], 2048
    $region97: #{tpu_custom_call.1} parent=1 // pred_fallthru
      _
    // Predicated region
    $region98: #{tpu_custom_call.1} parent=1 // pred_check
      _
    $region99: #{tpu_custom_call.1} parent=1 // pred_check_branch
      %151 = sbr.rel (0) target = $region101
    $region100: #{tpu_custom_call.1} parent=1 // pred_region
      %152 = dma.done [#allocation7], 2048
    $region101: #{tpu_custom_call.1} parent=1 // pred_fallthru
      _
    // Predicated region
    $region102: #{tpu_custom_call.1} parent=1 // pred_check
      _
    $region103: #{tpu_custom_call.1} parent=1 // pred_check_branch
      %154 = sbr.rel (0) target = $region105
    $region104: #{tpu_custom_call.1} parent=1 // pred_region
      %155 = dma.done [#allocation10], 2048
    $region105: #{tpu_custom_call.1} parent=1 // pred_fallthru
      _
    // Predicated region
    $region106: #{tpu_custom_call.1} parent=1 // pred_check
      _
    $region107: #{tpu_custom_call.1} parent=1 // pred_check_branch
      %157 = sbr.rel (0) target = $region109
    $region108: #{tpu_custom_call.1} parent=1 // pred_region
      %158 = dma.done [#allocation10], 2048
    $region109: #{tpu_custom_call.1} parent=1 // pred_fallthru
      _
    // Predicated region
    $region110: #{tpu_custom_call.1} parent=1 // pred_check
      _
    $region111: #{tpu_custom_call.1} parent=1 // pred_check_branch
      %160 = sbr.rel (0) target = $region113
    $region112: #{tpu_custom_call.1} parent=1 // pred_region
      %161 = dma.done [#allocation13], 8192
    $region113: #{tpu_custom_call.1} parent=1 // pred_fallthru
      _
    // Predicated region
    $region114: #{tpu_custom_call.1} parent=1 // pred_check
      _
    $region115: #{tpu_custom_call.1} parent=1 // pred_check_branch
      %163 = sbr.rel (0) target = $region117
    $region116: #{tpu_custom_call.1} parent=1 // pred_region
      %164 = dma.done [#allocation13], 8192
    $region117: #{tpu_custom_call.1} parent=1 // pred_fallthru
      _
    %v165 = vld [vmem:[%s0] sm:$0xff]
    %v166 = vld [vmem:[%s0 + $0x8] sm:$0xff]
    %v167 = vld [vmem:[%s0 + $0x10] sm:$0xff]
    %v168 = vld [vmem:[%s0 + $0x18] sm:$0xff]
    %v169 = vlaneseq
    %v170 = vand.u32 %v169, 127
    %171 = vset.pattern.permute.xlu0 0
    %172 = vperm.xlu0 %171, %v165
    %v173 = vpop.permute.xlu0 %172
    %174 = vset.pattern.permute.xlu0 0
    %175 = vperm.xlu0 %174, %v166
    %v176 = vpop.permute.xlu0 %175
    %177 = vset.pattern.permute.xlu0 0
    %178 = vperm.xlu0 %177, %v167
    %v179 = vpop.permute.xlu0 %178
    %180 = vset.pattern.permute.xlu0 0
    %181 = vperm.xlu0 %180, %v168
    %v182 = vpop.permute.xlu0 %181
    %vm183 = vcmp.eq.s32.totalorder %v173, %v170
    %vm184 = vcmp.eq.s32.totalorder %v176, %v170
    %vm185 = vcmp.eq.s32.totalorder %v179, %v170
    %vm186 = vcmp.eq.s32.totalorder %v182, %v170
    %v187 = vsel %vm183, 1, 0
    %v188 = vsel %vm184, 1, 0
    %v189 = vsel %vm185, 1, 0
    %v190 = vsel %vm186, 1, 0
    %v191 = vcvt.s32.f32 %v187
    %v192 = vcvt.s32.f32 %v188
    %v193 = vcvt.s32.f32 %v189
    %v194 = vcvt.s32.f32 %v190
    %v195 = vlaneseq
    %v196 = vshrl.u32 %v195, 7
    %v197 = vadd.s32 %v196, 8
    %v198 = vadd.s32 %v196, 16
    %v199 = vadd.s32 %v196, 24
    %v200 = vand.u32 %v196, 7
    %v201 = vand.u32 %v197, 7
    %v202 = vand.u32 %v198, 7
    %v203 = vand.u32 %v199, 7
    %vm204 = vcmp.eq.s32.totalorder %v200, %v170
    %vm205 = vcmp.eq.s32.totalorder %v201, %v170
    %vm206 = vcmp.eq.s32.totalorder %v202, %v170
    %vm207 = vcmp.eq.s32.totalorder %v203, %v170
    %v208 = vsel %vm204, 1, 0
    %v209 = vsel %vm205, 1, 0
    %v210 = vsel %vm206, 1, 0
    %v211 = vsel %vm207, 1, 0
    %v212 = vcvt.s32.f32 %v208
    %v213 = vcvt.s32.f32 %v209
    %v214 = vcvt.s32.f32 %v210
    %v215 = vcvt.s32.f32 %v211
    %v216 = vld [vmem:[%s2] sm:$0xff]
    %v217 = vld [vmem:[%s2 + $0x8] sm:$0xff]
    %v218 = vld [vmem:[%s2 + $0x10] sm:$0xff]
    %v219 = vld [vmem:[%s2 + $0x18] sm:$0xff]
    %v220 = vld [vmem:[%s3] sm:$0xff]
    %vm221 = vcmask 64512
    %v223 = vsel %vm221, %v212, 0
    %v226 = vsel %vm221, %v213, 0
    %v229 = vsel %vm221, %v214, 0
    %v232 = vsel %vm221, %v215, 0
    %234 = vmatprep.subr.mxu0 0.0
    %235 = vmatpush1.msra.mxu0 %v220
    %236 = vmatprep.subr.mxu0 0.0
    %237 = vmatpush1.msra.mxu0 0.0
    %238 = vmatprep.subr.mxu0 0.0
    %239 = vmatpush1.msra.mxu0 0.0
    %240 = vmatprep.subr.mxu0 0.0
    %241 = vmatpush1.msra.mxu0 0.0
    %242 = vmatprep.subr.mxu0 0.0
    %243 = vmatpush1.msra.mxu0 0.0
    %244 = vmatprep.subr.mxu0 0.0
    %245 = vmatpush1.msra.mxu0 0.0
    %246 = vmatprep.subr.mxu0 0.0
    %247 = vmatpush1.msra.mxu0 0.0
    %248 = vmatprep.subr.mxu0 0.0
    %249 = vmatpush1.msra.mxu0 0.0
    %250 = vmatprep.subr.mxu0 0.0
    %251 = vmatpush1.msra.mxu0 0.0
    %252 = vmatprep.subr.mxu0 0.0
    %253 = vmatpush1.msra.mxu0 0.0
    %254 = vmatprep.subr.mxu0 0.0
    %255 = vmatpush1.msra.mxu0 0.0
    %256 = vmatprep.subr.mxu0 0.0
    %257 = vmatpush1.msra.mxu0 0.0
    %258 = vmatprep.subr.mxu0 0.0
    %259 = vmatpush1.msra.mxu0 0.0
    %260 = vmatprep.subr.mxu0 0.0
    %261 = vmatpush1.msra.mxu0 0.0
    %262 = vmatprep.subr.mxu0 0.0
    %263 = vmatpush1.msra.mxu0 0.0
    %264 = vmatprep.subr.mxu0 0.0
    %265 = vmatpush1.msra.mxu0 0.0
    %266 = vmatprep.subr.mxu0 0.0
    %267 = vmatpush1.msra.mxu0 0.0
    %268 = vmatprep.subr.mxu0 0.0
    %269 = vmatpush1.msra.mxu0 0.0
    %270 = vmatprep.subr.mxu0 0.0
    %271 = vmatpush1.msra.mxu0 0.0
    %272 = vmatprep.subr.mxu0 0.0
    %273 = vmatpush1.msra.mxu0 0.0
    %274 = vmatprep.subr.mxu0 0.0
    %275 = vmatpush1.msra.mxu0 0.0
    %276 = vmatprep.subr.mxu0 0.0
    %277 = vmatpush1.msra.mxu0 0.0
    %278 = vmatprep.subr.mxu0 0.0
    %279 = vmatpush1.msra.mxu0 0.0
    %280 = vmatprep.subr.mxu0 0.0
    %281 = vmatpush1.msra.mxu0 0.0
    %282 = vmatprep.subr.mxu0 0.0
    %283 = vmatpush1.msra.mxu0 0.0
    %284 = vmatprep.subr.mxu0 0.0
    %285 = vmatpush1.msra.mxu0 0.0
    %286 = vmatprep.subr.mxu0 0.0
    %287 = vmatpush1.msra.mxu0 0.0
    %288 = vmatprep.subr.mxu0 0.0
    %289 = vmatpush1.msra.mxu0 0.0
    %290 = vmatprep.subr.mxu0 0.0
    %291 = vmatpush1.msra.mxu0 0.0
    %292 = vmatprep.subr.mxu0 0.0
    %293 = vmatpush1.msra.mxu0 0.0
    %294 = vmatprep.subr.mxu0 0.0
    %295 = vmatpush1.msra.mxu0 0.0
    %296 = vmatprep.subr.mxu0 0.0
    %297 = vmatpush1.msra.mxu0 0.0
    %298 = vmatprep.mubr.f32.mxu0 0.0
    %299 = vmatmul.mubr.f32.gmra.mrb[0].mxu0 %v223
    %v300 = vpop.f32.mrb[0].mxu0
    %v301 = vadd.f32 0.0, %v300
    %v302 = vpop.f32.mrb[0].mxu0
    %303 = vmatprep.mubr.f32.mxu0 0.0
    %304 = vmatmul.mubr.f32.gmra.mrb[0].mxu0 %v226
    %v305 = vpop.f32.mrb[0].mxu0
    %v306 = vadd.f32 0.0, %v305
    %v307 = vpop.f32.mrb[0].mxu0
    %308 = vmatprep.mubr.f32.mxu0 0.0
    %309 = vmatmul.mubr.f32.gmra.mrb[0].mxu0 %v229
    %v310 = vpop.f32.mrb[0].mxu0
    %v311 = vadd.f32 0.0, %v310
    %v312 = vpop.f32.mrb[0].mxu0
    %313 = vmatprep.mubr.f32.mxu0 0.0
    %314 = vmatmul.mubr.f32.gmra.mrb[0].mxu0 %v232
    %v315 = vpop.f32.mrb[0].mxu0
    %v316 = vadd.f32 0.0, %v315
    %v317 = vpop.f32.mrb[0].mxu0
    %318 = vdwg.mxu0
    %vm319 = vcmask 261120
    %v321 = vsel %vm319, %v191, 0
    %v324 = vsel %vm319, %v192, 0
    %v327 = vsel %vm319, %v193, 0
    %v330 = vsel %vm319, %v194, 0
    %332 = vmatprep.subr.mxu0 0.0
    %333 = vmatpush1.msra.mxu0 %v216
    %334 = vmatprep.subr.mxu0 0.0
    %335 = vmatpush1.msra.mxu0 %v217
    %336 = vmatprep.subr.mxu0 0.0
    %337 = vmatpush1.msra.mxu0 %v218
    %338 = vmatprep.subr.mxu0 0.0
    %339 = vmatpush1.msra.mxu0 %v219
    %340 = vmatprep.subr.mxu0 0.0
    %341 = vmatpush1.msra.mxu0 0.0
    %342 = vmatprep.subr.mxu0 0.0
    %343 = vmatpush1.msra.mxu0 0.0
    %344 = vmatprep.subr.mxu0 0.0
    %345 = vmatpush1.msra.mxu0 0.0
    %346 = vmatprep.subr.mxu0 0.0
    %347 = vmatpush1.msra.mxu0 0.0
    %348 = vmatprep.subr.mxu0 0.0
    %349 = vmatpush1.msra.mxu0 0.0
    %350 = vmatprep.subr.mxu0 0.0
    %351 = vmatpush1.msra.mxu0 0.0
    %352 = vmatprep.subr.mxu0 0.0
    %353 = vmatpush1.msra.mxu0 0.0
    %354 = vmatprep.subr.mxu0 0.0
    %355 = vmatpush1.msra.mxu0 0.0
    %356 = vmatprep.subr.mxu0 0.0
    %357 = vmatpush1.msra.mxu0 0.0
    %358 = vmatprep.subr.mxu0 0.0
    %359 = vmatpush1.msra.mxu0 0.0
    %360 = vmatprep.subr.mxu0 0.0
    %361 = vmatpush1.msra.mxu0 0.0
    %362 = vmatprep.subr.mxu0 0.0
    %363 = vmatpush1.msra.mxu0 0.0
    %364 = vmatprep.subr.mxu0 0.0
    %365 = vmatpush1.msra.mxu0 0.0
    %366 = vmatprep.subr.mxu0 0.0
    %367 = vmatpush1.msra.mxu0 0.0
    %368 = vmatprep.subr.mxu0 0.0
    %369 = vmatpush1.msra.mxu0 0.0
    %370 = vmatprep.subr.mxu0 0.0
    %371 = vmatpush1.msra.mxu0 0.0
    %372 = vmatprep.subr.mxu0 0.0
    %373 = vmatpush1.msra.mxu0 0.0
    %374 = vmatprep.subr.mxu0 0.0
    %375 = vmatpush1.msra.mxu0 0.0
    %376 = vmatprep.subr.mxu0 0.0
    %377 = vmatpush1.msra.mxu0 0.0
    %378 = vmatprep.subr.mxu0 0.0
    %379 = vmatpush1.msra.mxu0 0.0
    %380 = vmatprep.subr.mxu0 0.0
    %381 = vmatpush1.msra.mxu0 0.0
    %382 = vmatprep.subr.mxu0 0.0
    %383 = vmatpush1.msra.mxu0 0.0
    %384 = vmatprep.subr.mxu0 0.0
    %385 = vmatpush1.msra.mxu0 0.0
    %386 = vmatprep.subr.mxu0 0.0
    %387 = vmatpush1.msra.mxu0 0.0
    %388 = vmatprep.subr.mxu0 0.0
    %389 = vmatpush1.msra.mxu0 0.0
    %390 = vmatprep.subr.mxu0 0.0
    %391 = vmatpush1.msra.mxu0 0.0
    %392 = vmatprep.subr.mxu0 0.0
    %393 = vmatpush1.msra.mxu0 0.0
    %394 = vmatprep.subr.mxu0 0.0
    %395 = vmatpush1.msra.mxu0 0.0
    %396 = vmatprep.mubr.f32.mxu0 0.0
    %397 = vmatmul.mubr.f32.gmra.mrb[0].mxu0 %v321
    %v398 = vpop.f32.mrb[0].mxu0
    %v399 = vadd.f32 %v301, %v398
    %v400 = vpop.f32.mrb[0].mxu0
    %401 = vmatprep.mubr.f32.mxu0 0.0
    %402 = vmatmul.mubr.f32.gmra.mrb[0].mxu0 %v324
    %v403 = vpop.f32.mrb[0].mxu0
    %v404 = vadd.f32 %v306, %v403
    %v405 = vpop.f32.mrb[0].mxu0
    %406 = vmatprep.mubr.f32.mxu0 0.0
    %407 = vmatmul.mubr.f32.gmra.mrb[0].mxu0 %v327
    %v408 = vpop.f32.mrb[0].mxu0
    %v409 = vadd.f32 %v311, %v408
    %v410 = vpop.f32.mrb[0].mxu0
    %411 = vmatprep.mubr.f32.mxu0 0.0
    %412 = vmatmul.mubr.f32.gmra.mrb[0].mxu0 %v330
    %v413 = vpop.f32.mrb[0].mxu0
    %v414 = vadd.f32 %v316, %v413
    %v415 = vpop.f32.mrb[0].mxu0
    %416 = vdwg.mxu0
    %v417 = vld [vmem:[%s4] sm:$0x1]
    %v418 = vld [vmem:[%s5] sm:$0x1]
    %419 = vadd.xlane.f32.xlu0 %v399
    %v420 = vpop.xlane.xlu0 %419
    %421 = vadd.xlane.f32.xlu0 %v404
    %v422 = vpop.xlane.xlu0 %421
    %423 = vadd.xlane.f32.xlu0 %v409
    %v424 = vpop.xlane.xlu0 %423
    %425 = vadd.xlane.f32.xlu0 %v414
    %v426 = vpop.xlane.xlu0 %425
    %v427 = vrcp.pop 128.0
    %v428 = vmul.f32 %v420, %v427
    %v429 = vmul.f32 %v422, %v427
    %v430 = vmul.f32 %v424, %v427
    %v431 = vmul.f32 %v426, %v427
    %v432 = vsub.f32 %v399, %v428
    %v433 = vsub.f32 %v404, %v429
    %v434 = vsub.f32 %v409, %v430
    %v435 = vsub.f32 %v414, %v431
    %v436 = vmul.f32 %v432, %v432
    %v437 = vmul.f32 %v433, %v433
    %v438 = vmul.f32 %v434, %v434
    %v439 = vmul.f32 %v435, %v435
    %440 = vadd.xlane.f32.xlu0 %v436
    %v441 = vpop.xlane.xlu0 %440
    %442 = vadd.xlane.f32.xlu0 %v437
    %v443 = vpop.xlane.xlu0 %442
    %444 = vadd.xlane.f32.xlu0 %v438
    %v445 = vpop.xlane.xlu0 %444
    %446 = vadd.xlane.f32.xlu0 %v439
    %v447 = vpop.xlane.xlu0 %446
    %v448 = vmul.f32 %v441, %v427
    %v449 = vmul.f32 %v443, %v427
    %v450 = vmul.f32 %v445, %v427
    %v451 = vmul.f32 %v447, %v427
    %v452 = vadd.f32 %v448, 1e-12
    %v453 = vadd.f32 %v449, 1e-12
    %v454 = vadd.f32 %v450, 1e-12
    %v455 = vadd.f32 %v451, 1e-12
    %v456 = vrsqrt.pop %v452
    %v457 = vrsqrt.pop %v453
    %v458 = vrsqrt.pop %v454
    %v459 = vrsqrt.pop %v455
    %v460 = vmul.f32 %v432, %v456
    %v461 = vmul.f32 %v433, %v457
    %v462 = vmul.f32 %v434, %v458
    %v463 = vmul.f32 %v435, %v459
    %v465 = vlaneseq
    %v466 = vshrl.u32 %v465, 7
    %v467 = vsub.s32 0, %v466
    %v468 = vrot.slane %v417, %v467
    %v470 = vmul.f32 %v460, %v468
    %v471 = vmul.f32 %v461, %v468
    %v472 = vmul.f32 %v462, %v468
    %v473 = vmul.f32 %v463, %v468
    %v475 = vlaneseq
    %v476 = vshrl.u32 %v475, 7
    %v477 = vsub.s32 0, %v476
    %v478 = vrot.slane %v418, %v477
    %v480 = vadd.f32 %v470, %v478
    %v481 = vadd.f32 %v471, %v478
    %v482 = vadd.f32 %v472, %v478
    %v483 = vadd.f32 %v473, %v478
    %v484 = vmul.u32 %v196, 8
    %vm485 = vcmp.eq.s32.totalorder %v170, %v484
    %v486 = vsel %vm485, 1, 0
    %v487 = vcvt.s32.f32 %v486
    %v489 = vsel %vm319, %v487, 0
    %491 = vmatprep.subr.mxu0 0.0
    %492 = vmatpush1.msra.mxu0 %v480
    %493 = vmatprep.subr.mxu0 0.0
    %494 = vmatpush1.msra.mxu0 %v481
    %495 = vmatprep.subr.mxu0 0.0
    %496 = vmatpush1.msra.mxu0 %v482
    %497 = vmatprep.subr.mxu0 0.0
    %498 = vmatpush1.msra.mxu0 %v483
    %499 = vmatprep.subr.mxu0 0.0
    %500 = vmatpush1.msra.mxu0 0.0
    %501 = vmatprep.subr.mxu0 0.0
    %502 = vmatpush1.msra.mxu0 0.0
    %503 = vmatprep.subr.mxu0 0.0
    %504 = vmatpush1.msra.mxu0 0.0
    %505 = vmatprep.subr.mxu0 0.0
    %506 = vmatpush1.msra.mxu0 0.0
    %507 = vmatprep.subr.mxu0 0.0
    %508 = vmatpush1.msra.mxu0 0.0
    %509 = vmatprep.subr.mxu0 0.0
    %510 = vmatpush1.msra.mxu0 0.0
    %511 = vmatprep.subr.mxu0 0.0
    %512 = vmatpush1.msra.mxu0 0.0
    %513 = vmatprep.subr.mxu0 0.0
    %514 = vmatpush1.msra.mxu0 0.0
    %515 = vmatprep.subr.mxu0 0.0
    %516 = vmatpush1.msra.mxu0 0.0
    %517 = vmatprep.subr.mxu0 0.0
    %518 = vmatpush1.msra.mxu0 0.0
    %519 = vmatprep.subr.mxu0 0.0
    %520 = vmatpush1.msra.mxu0 0.0
    %521 = vmatprep.subr.mxu0 0.0
    %522 = vmatpush1.msra.mxu0 0.0
    %523 = vmatprep.subr.mxu0 0.0
    %524 = vmatpush1.msra.mxu0 0.0
    %525 = vmatprep.subr.mxu0 0.0
    %526 = vmatpush1.msra.mxu0 0.0
    %527 = vmatprep.subr.mxu0 0.0
    %528 = vmatpush1.msra.mxu0 0.0
    %529 = vmatprep.subr.mxu0 0.0
    %530 = vmatpush1.msra.mxu0 0.0
    %531 = vmatprep.subr.mxu0 0.0
    %532 = vmatpush1.msra.mxu0 0.0
    %533 = vmatprep.subr.mxu0 0.0
    %534 = vmatpush1.msra.mxu0 0.0
    %535 = vmatprep.subr.mxu0 0.0
    %536 = vmatpush1.msra.mxu0 0.0
    %537 = vmatprep.subr.mxu0 0.0
    %538 = vmatpush1.msra.mxu0 0.0
    %539 = vmatprep.subr.mxu0 0.0
    %540 = vmatpush1.msra.mxu0 0.0
    %541 = vmatprep.subr.mxu0 0.0
    %542 = vmatpush1.msra.mxu0 0.0
    %543 = vmatprep.subr.mxu0 0.0
    %544 = vmatpush1.msra.mxu0 0.0
    %545 = vmatprep.subr.mxu0 0.0
    %546 = vmatpush1.msra.mxu0 0.0
    %547 = vmatprep.subr.mxu0 0.0
    %548 = vmatpush1.msra.mxu0 0.0
    %549 = vmatprep.subr.mxu0 0.0
    %550 = vmatpush1.msra.mxu0 0.0
    %551 = vmatprep.subr.mxu0 0.0
    %552 = vmatpush1.msra.mxu0 0.0
    %553 = vmatprep.subr.mxu0 0.0
    %554 = vmatpush1.msra.mxu0 0.0
    %555 = vmatprep.mubr.f32.mxu0 0.0
    %556 = vmatmul.mubr.f32.gmra.mrb[0].mxu0 %v489
    %v557 = vpop.f32.mrb[0].mxu0
    %v558 = vadd.f32 0.0, %v557
    %v559 = vpop.f32.mrb[0].mxu0
    %560 = vdwg.mxu0
    %v561 = vxor.u32 %v484, %v170
    %vm562 = vcmp.lt.s32.totalorder %v561, 8
    %v563 = vld [vmem:[#allocation3] sm:$0x1]
    %vm564 = vcmp.gt.f32.partialorder %v563, 0.5
    %v565 = vsel %vm564, 1, 0
    %v566 = vlaneseq
    %v567 = vshrl.u32 %v566, 7
    %v568 = vsub.s32 0, %v567
    %v569 = vrot.slane %v565, %v568
    %vm570 = vcmp.eq.s32.totalorder %v569, 1
    %vm571 = vmand %vm562, %vm570
    %v572 = vsel %vm571, 0.0, -1e+09
    %v573 = vld [vmem:[#allocation6] sm:$0xff]
    %v574 = vld [vmem:[#allocation6 + $0x8] sm:$0xff]
    %v575 = vld [vmem:[#allocation6 + $0x10] sm:$0xff]
    %v576 = vld [vmem:[#allocation6 + $0x18] sm:$0xff]
    %v577 = vld [vmem:[#allocation6 + $0x20] sm:$0xff]
    %v578 = vld [vmem:[#allocation6 + $0x28] sm:$0xff]
    %v579 = vld [vmem:[#allocation6 + $0x30] sm:$0xff]
    %v580 = vld [vmem:[#allocation6 + $0x38] sm:$0xff]
    %v581 = vld [vmem:[#allocation6 + $0x40] sm:$0xff]
    %v582 = vld [vmem:[#allocation6 + $0x48] sm:$0xff]
    %v583 = vld [vmem:[#allocation6 + $0x50] sm:$0xff]
    %v584 = vld [vmem:[#allocation6 + $0x58] sm:$0xff]
    %v585 = vld [vmem:[#allocation6 + $0x60] sm:$0xff]
    %v586 = vld [vmem:[#allocation6 + $0x68] sm:$0xff]
    %v587 = vld [vmem:[#allocation6 + $0x70] sm:$0xff]
    %v588 = vld [vmem:[#allocation6 + $0x78] sm:$0xff]
    %v589 = vld [vmem:[%s7] sm:$0x1]
    %v591 = vlaneseq
    %v592 = vshrl.u32 %v591, 7
    %v593 = vsub.s32 0, %v592
    %v594 = vrot.slane %v589, %v593
    %596 = vmatprep.subr.mxu0 0.0
    %597 = vmatpush1.msra.mxu0 %v573
    %598 = vmatprep.subr.mxu0 0.0
    %599 = vmatpush1.msra.mxu0 %v574
    %600 = vmatprep.subr.mxu0 0.0
    %601 = vmatpush1.msra.mxu0 %v575
    %602 = vmatprep.subr.mxu0 0.0
    %603 = vmatpush1.msra.mxu0 %v576
    %604 = vmatprep.subr.mxu0 0.0
    %605 = vmatpush1.msra.mxu0 %v577
    %606 = vmatprep.subr.mxu0 0.0
    %607 = vmatpush1.msra.mxu0 %v578
    %608 = vmatprep.subr.mxu0 0.0
    %609 = vmatpush1.msra.mxu0 %v579
    %610 = vmatprep.subr.mxu0 0.0
    %611 = vmatpush1.msra.mxu0 %v580
    %612 = vmatprep.subr.mxu0 0.0
    %613 = vmatpush1.msra.mxu0 %v581
    %614 = vmatprep.subr.mxu0 0.0
    %615 = vmatpush1.msra.mxu0 %v582
    %616 = vmatprep.subr.mxu0 0.0
    %617 = vmatpush1.msra.mxu0 %v583
    %618 = vmatprep.subr.mxu0 0.0
    %619 = vmatpush1.msra.mxu0 %v584
    %620 = vmatprep.subr.mxu0 0.0
    %621 = vmatpush1.msra.mxu0 %v585
    %622 = vmatprep.subr.mxu0 0.0
    %623 = vmatpush1.msra.mxu0 %v586
    %624 = vmatprep.subr.mxu0 0.0
    %625 = vmatpush1.msra.mxu0 %v587
    %626 = vmatprep.subr.mxu0 0.0
    %627 = vmatpush1.msra.mxu0 %v588
    %628 = vmatprep.subr.mxu0 0.0
    %629 = vmatpush1.msra.mxu0 0.0
    %630 = vmatprep.subr.mxu0 0.0
    %631 = vmatpush1.msra.mxu0 0.0
    %632 = vmatprep.subr.mxu0 0.0
    %633 = vmatpush1.msra.mxu0 0.0
    %634 = vmatprep.subr.mxu0 0.0
    %635 = vmatpush1.msra.mxu0 0.0
    %636 = vmatprep.subr.mxu0 0.0
    %637 = vmatpush1.msra.mxu0 0.0
    %638 = vmatprep.subr.mxu0 0.0
    %639 = vmatpush1.msra.mxu0 0.0
    %640 = vmatprep.subr.mxu0 0.0
    %641 = vmatpush1.msra.mxu0 0.0
    %642 = vmatprep.subr.mxu0 0.0
    %643 = vmatpush1.msra.mxu0 0.0
    %644 = vmatprep.subr.mxu0 0.0
    %645 = vmatpush1.msra.mxu0 0.0
    %646 = vmatprep.subr.mxu0 0.0
    %647 = vmatpush1.msra.mxu0 0.0
    %648 = vmatprep.subr.mxu0 0.0
    %649 = vmatpush1.msra.mxu0 0.0
    %650 = vmatprep.subr.mxu0 0.0
    %651 = vmatpush1.msra.mxu0 0.0
    %652 = vmatprep.subr.mxu0 0.0
    %653 = vmatpush1.msra.mxu0 0.0
    %654 = vmatprep.subr.mxu0 0.0
    %655 = vmatpush1.msra.mxu0 0.0
    %656 = vmatprep.subr.mxu0 0.0
    %657 = vmatpush1.msra.mxu0 0.0
    %658 = vmatprep.subr.mxu0 0.0
    %659 = vmatpush1.msra.mxu0 0.0
    %660 = vmatprep.mubr.f32.mxu0 0.0
    %661 = vmatmul.mubr.f32.gmra.mrb[0].mxu0 %v558
    %v662 = vpop.f32.mrb[0].mxu0
    %v663 = vadd.f32 %v594, %v662
    %v664 = vpop.f32.mrb[0].mxu0
    %665 = vdwg.mxu0
    %v666 = vld [vmem:[#allocation8] sm:$0xff]
    %v667 = vld [vmem:[#allocation8 + $0x8] sm:$0xff]
    %v668 = vld [vmem:[#allocation8 + $0x10] sm:$0xff]
    %v669 = vld [vmem:[#allocation8 + $0x18] sm:$0xff]
    %v670 = vld [vmem:[#allocation8 + $0x20] sm:$0xff]
    %v671 = vld [vmem:[#allocation8 + $0x28] sm:$0xff]
    %v672 = vld [vmem:[#allocation8 + $0x30] sm:$0xff]
    %v673 = vld [vmem:[#allocation8 + $0x38] sm:$0xff]
    %v674 = vld [vmem:[#allocation8 + $0x40] sm:$0xff]
    %v675 = vld [vmem:[#allocation8 + $0x48] sm:$0xff]
    %v676 = vld [vmem:[#allocation8 + $0x50] sm:$0xff]
    %v677 = vld [vmem:[#allocation8 + $0x58] sm:$0xff]
    %v678 = vld [vmem:[#allocation8 + $0x60] sm:$0xff]
    %v679 = vld [vmem:[#allocation8 + $0x68] sm:$0xff]
    %v680 = vld [vmem:[#allocation8 + $0x70] sm:$0xff]
    %v681 = vld [vmem:[#allocation8 + $0x78] sm:$0xff]
    %v682 = vld [vmem:[%s9] sm:$0x1]
    %v684 = vlaneseq
    %v685 = vshrl.u32 %v684, 7
    %v686 = vsub.s32 0, %v685
    %v687 = vrot.slane %v682, %v686
    %689 = vmatprep.subr.mxu0 0.0
    %690 = vmatpush1.msra.mxu0 %v666
    %691 = vmatprep.subr.mxu0 0.0
    %692 = vmatpush1.msra.mxu0 %v667
    %693 = vmatprep.subr.mxu0 0.0
    %694 = vmatpush1.msra.mxu0 %v668
    %695 = vmatprep.subr.mxu0 0.0
    %696 = vmatpush1.msra.mxu0 %v669
    %697 = vmatprep.subr.mxu0 0.0
    %698 = vmatpush1.msra.mxu0 %v670
    %699 = vmatprep.subr.mxu0 0.0
    %700 = vmatpush1.msra.mxu0 %v671
    %701 = vmatprep.subr.mxu0 0.0
    %702 = vmatpush1.msra.mxu0 %v672
    %703 = vmatprep.subr.mxu0 0.0
    %704 = vmatpush1.msra.mxu0 %v673
    %705 = vmatprep.subr.mxu0 0.0
    %706 = vmatpush1.msra.mxu0 %v674
    %707 = vmatprep.subr.mxu0 0.0
    %708 = vmatpush1.msra.mxu0 %v675
    %709 = vmatprep.subr.mxu0 0.0
    %710 = vmatpush1.msra.mxu0 %v676
    %711 = vmatprep.subr.mxu0 0.0
    %712 = vmatpush1.msra.mxu0 %v677
    %713 = vmatprep.subr.mxu0 0.0
    %714 = vmatpush1.msra.mxu0 %v678
    %715 = vmatprep.subr.mxu0 0.0
    %716 = vmatpush1.msra.mxu0 %v679
    %717 = vmatprep.subr.mxu0 0.0
    %718 = vmatpush1.msra.mxu0 %v680
    %719 = vmatprep.subr.mxu0 0.0
    %720 = vmatpush1.msra.mxu0 %v681
    %721 = vmatprep.subr.mxu0 0.0
    %722 = vmatpush1.msra.mxu0 0.0
    %723 = vmatprep.subr.mxu0 0.0
    %724 = vmatpush1.msra.mxu0 0.0
    %725 = vmatprep.subr.mxu0 0.0
    %726 = vmatpush1.msra.mxu0 0.0
    %727 = vmatprep.subr.mxu0 0.0
    %728 = vmatpush1.msra.mxu0 0.0
    %729 = vmatprep.subr.mxu0 0.0
    %730 = vmatpush1.msra.mxu0 0.0
    %731 = vmatprep.subr.mxu0 0.0
    %732 = vmatpush1.msra.mxu0 0.0
    %733 = vmatprep.subr.mxu0 0.0
    %734 = vmatpush1.msra.mxu0 0.0
    %735 = vmatprep.subr.mxu0 0.0
    %736 = vmatpush1.msra.mxu0 0.0
    %737 = vmatprep.subr.mxu0 0.0
    %738 = vmatpush1.msra.mxu0 0.0
    %739 = vmatprep.subr.mxu0 0.0
    %740 = vmatpush1.msra.mxu0 0.0
    %741 = vmatprep.subr.mxu0 0.0
    %742 = vmatpush1.msra.mxu0 0.0
    %743 = vmatprep.subr.mxu0 0.0
    %744 = vmatpush1.msra.mxu0 0.0
    %745 = vmatprep.subr.mxu0 0.0
    %746 = vmatpush1.msra.mxu0 0.0
    %747 = vmatprep.subr.mxu0 0.0
    %748 = vmatpush1.msra.mxu0 0.0
    %749 = vmatprep.subr.mxu0 0.0
    %750 = vmatpush1.msra.mxu0 0.0
    %751 = vmatprep.subr.mxu0 0.0
    %752 = vmatpush1.msra.mxu0 0.0
    %753 = vmatprep.mubr.f32.mxu0 0.0
    %754 = vmatmul.mubr.f32.gmra.mrb[0].mxu0 %v480
    %v755 = vpop.f32.mrb[0].mxu0
    %v756 = vadd.f32 %v687, %v755
    %v757 = vpop.f32.mrb[0].mxu0
    %758 = vmatprep.mubr.f32.mxu0 0.0
    %759 = vmatmul.mubr.f32.gmra.mrb[0].mxu0 %v481
    %v760 = vpop.f32.mrb[0].mxu0
    %v761 = vadd.f32 %v687, %v760
    %v762 = vpop.f32.mrb[0].mxu0
    %763 = vmatprep.mubr.f32.mxu0 0.0
    %764 = vmatmul.mubr.f32.gmra.mrb[0].mxu0 %v482
    %v765 = vpop.f32.mrb[0].mxu0
    %v766 = vadd.f32 %v687, %v765
    %v767 = vpop.f32.mrb[0].mxu0
    %768 = vmatprep.mubr.f32.mxu0 0.0
    %769 = vmatmul.mubr.f32.gmra.mrb[0].mxu0 %v483
    %v770 = vpop.f32.mrb[0].mxu0
    %v771 = vadd.f32 %v687, %v770
    %v772 = vpop.f32.mrb[0].mxu0
    %773 = vdwg.mxu0
    %v774 = vld [vmem:[#allocation9] sm:$0xff]
    %v775 = vld [vmem:[#allocation9 + $0x8] sm:$0xff]
    %v776 = vld [vmem:[#allocation9 + $0x10] sm:$0xff]
    %v777 = vld [vmem:[#allocation9 + $0x18] sm:$0xff]
    %v778 = vld [vmem:[#allocation9 + $0x20] sm:$0xff]
    %v779 = vld [vmem:[#allocation9 + $0x28] sm:$0xff]
    %v780 = vld [vmem:[#allocation9 + $0x30] sm:$0xff]
    %v781 = vld [vmem:[#allocation9 + $0x38] sm:$0xff]
    %v782 = vld [vmem:[#allocation9 + $0x40] sm:$0xff]
    %v783 = vld [vmem:[#allocation9 + $0x48] sm:$0xff]
    %v784 = vld [vmem:[#allocation9 + $0x50] sm:$0xff]
    %v785 = vld [vmem:[#allocation9 + $0x58] sm:$0xff]
    %v786 = vld [vmem:[#allocation9 + $0x60] sm:$0xff]
    %v787 = vld [vmem:[#allocation9 + $0x68] sm:$0xff]
    %v788 = vld [vmem:[#allocation9 + $0x70] sm:$0xff]
    %v789 = vld [vmem:[#allocation9 + $0x78] sm:$0xff]
    %v790 = vld [vmem:[%s11] sm:$0x1]
    %v792 = vlaneseq
    %v793 = vshrl.u32 %v792, 7
    %v794 = vsub.s32 0, %v793
    %v795 = vrot.slane %v790, %v794
    %797 = vmatprep.subr.mxu0 0.0
    %798 = vmatpush1.msra.mxu0 %v774
    %799 = vmatprep.subr.mxu0 0.0
    %800 = vmatpush1.msra.mxu0 %v775
    %801 = vmatprep.subr.mxu0 0.0
    %802 = vmatpush1.msra.mxu0 %v776
    %803 = vmatprep.subr.mxu0 0.0
    %804 = vmatpush1.msra.mxu0 %v777
    %805 = vmatprep.subr.mxu0 0.0
    %806 = vmatpush1.msra.mxu0 %v778
    %807 = vmatprep.subr.mxu0 0.0
    %808 = vmatpush1.msra.mxu0 %v779
    %809 = vmatprep.subr.mxu0 0.0
    %810 = vmatpush1.msra.mxu0 %v780
    %811 = vmatprep.subr.mxu0 0.0
    %812 = vmatpush1.msra.mxu0 %v781
    %813 = vmatprep.subr.mxu0 0.0
    %814 = vmatpush1.msra.mxu0 %v782
    %815 = vmatprep.subr.mxu0 0.0
    %816 = vmatpush1.msra.mxu0 %v783
    %817 = vmatprep.subr.mxu0 0.0
    %818 = vmatpush1.msra.mxu0 %v784
    %819 = vmatprep.subr.mxu0 0.0
    %820 = vmatpush1.msra.mxu0 %v785
    %821 = vmatprep.subr.mxu0 0.0
    %822 = vmatpush1.msra.mxu0 %v786
    %823 = vmatprep.subr.mxu0 0.0
    %824 = vmatpush1.msra.mxu0 %v787
    %825 = vmatprep.subr.mxu0 0.0
    %826 = vmatpush1.msra.mxu0 %v788
    %827 = vmatprep.subr.mxu0 0.0
    %828 = vmatpush1.msra.mxu0 %v789
    %829 = vmatprep.subr.mxu0 0.0
    %830 = vmatpush1.msra.mxu0 0.0
    %831 = vmatprep.subr.mxu0 0.0
    %832 = vmatpush1.msra.mxu0 0.0
    %833 = vmatprep.subr.mxu0 0.0
    %834 = vmatpush1.msra.mxu0 0.0
    %835 = vmatprep.subr.mxu0 0.0
    %836 = vmatpush1.msra.mxu0 0.0
    %837 = vmatprep.subr.mxu0 0.0
    %838 = vmatpush1.msra.mxu0 0.0
    %839 = vmatprep.subr.mxu0 0.0
    %840 = vmatpush1.msra.mxu0 0.0
    %841 = vmatprep.subr.mxu0 0.0
    %842 = vmatpush1.msra.mxu0 0.0
    %843 = vmatprep.subr.mxu0 0.0
    %844 = vmatpush1.msra.mxu0 0.0
    %845 = vmatprep.subr.mxu0 0.0
    %846 = vmatpush1.msra.mxu0 0.0
    %847 = vmatprep.subr.mxu0 0.0
    %848 = vmatpush1.msra.mxu0 0.0
    %849 = vmatprep.subr.mxu0 0.0
    %850 = vmatpush1.msra.mxu0 0.0
    %851 = vmatprep.subr.mxu0 0.0
    %852 = vmatpush1.msra.mxu0 0.0
    %853 = vmatprep.subr.mxu0 0.0
    %854 = vmatpush1.msra.mxu0 0.0
    %855 = vmatprep.subr.mxu0 0.0
    %856 = vmatpush1.msra.mxu0 0.0
    %857 = vmatprep.subr.mxu0 0.0
    %858 = vmatpush1.msra.mxu0 0.0
    %859 = vmatprep.subr.mxu0 0.0
    %860 = vmatpush1.msra.mxu0 0.0
    %861 = vmatprep.mubr.f32.mxu0 0.0
    %862 = vmatmul.mubr.f32.gmra.mrb[0].mxu0 %v480
    %v863 = vpop.f32.mrb[0].mxu0
    %v864 = vadd.f32 %v795, %v863
    %v865 = vpop.f32.mrb[0].mxu0
    %866 = vmatprep.mubr.f32.mxu0 0.0
    %867 = vmatmul.mubr.f32.gmra.mrb[0].mxu0 %v481
    %v868 = vpop.f32.mrb[0].mxu0
    %v869 = vadd.f32 %v795, %v868
    %v870 = vpop.f32.mrb[0].mxu0
    %871 = vmatprep.mubr.f32.mxu0 0.0
    %872 = vmatmul.mubr.f32.gmra.mrb[0].mxu0 %v482
    %v873 = vpop.f32.mrb[0].mxu0
    %v874 = vadd.f32 %v795, %v873
    %v875 = vpop.f32.mrb[0].mxu0
    %876 = vmatprep.mubr.f32.mxu0 0.0
    %877 = vmatmul.mubr.f32.gmra.mrb[0].mxu0 %v483
    %v878 = vpop.f32.mrb[0].mxu0
    %v879 = vadd.f32 %v795, %v878
    %v880 = vpop.f32.mrb[0].mxu0
    %881 = vdwg.mxu0
    %v883 = vsel %vm319, %v663, 0
    %v886 = vsel %vm319, %v756, 0
    %v889 = vsel %vm319, %v761, 0
    %v892 = vsel %vm319, %v766, 0
    %v895 = vsel %vm319, %v771, 0
    %897 = vmatprep.subr.mxu0 0.0
    %898 = vmatpush1.xpose.msra.mxu0 %v886
    %899 = vmatprep.subr.mxu0 0.0
    %900 = vmatpush1.xpose.msra.mxu0 %v889
    %901 = vmatprep.subr.mxu0 0.0
    %902 = vmatpush1.xpose.msra.mxu0 %v892
    %903 = vmatprep.subr.mxu0 0.0
    %904 = vmatpush1.xpose.msra.mxu0 %v895
    %905 = vmatprep.subr.mxu0 0.0
    %906 = vmatpush1.xpose.msra.mxu0 0.0
    %907 = vmatprep.subr.mxu0 0.0
    %908 = vmatpush1.xpose.msra.mxu0 0.0
    %909 = vmatprep.subr.mxu0 0.0
    %910 = vmatpush1.xpose.msra.mxu0 0.0
    %911 = vmatprep.subr.mxu0 0.0
    %912 = vmatpush1.xpose.msra.mxu0 0.0
    %913 = vmatprep.subr.mxu0 0.0
    %914 = vmatpush1.xpose.msra.mxu0 0.0
    %915 = vmatprep.subr.mxu0 0.0
    %916 = vmatpush1.xpose.msra.mxu0 0.0
    %917 = vmatprep.subr.mxu0 0.0
    %918 = vmatpush1.xpose.msra.mxu0 0.0
    %919 = vmatprep.subr.mxu0 0.0
    %920 = vmatpush1.xpose.msra.mxu0 0.0
    %921 = vmatprep.subr.mxu0 0.0
    %922 = vmatpush1.xpose.msra.mxu0 0.0
    %923 = vmatprep.subr.mxu0 0.0
    %924 = vmatpush1.xpose.msra.mxu0 0.0
    %925 = vmatprep.subr.mxu0 0.0
    %926 = vmatpush1.xpose.msra.mxu0 0.0
    %927 = vmatprep.subr.mxu0 0.0
    %928 = vmatpush1.xpose.msra.mxu0 0.0
    %929 = vmatprep.subr.mxu0 0.0
    %930 = vmatpush1.xpose.msra.mxu0 0.0
    %931 = vmatprep.subr.mxu0 0.0
    %932 = vmatpush1.xpose.msra.mxu0 0.0
    %933 = vmatprep.subr.mxu0 0.0
    %934 = vmatpush1.xpose.msra.mxu0 0.0
    %935 = vmatprep.subr.mxu0 0.0
    %936 = vmatpush1.xpose.msra.mxu0 0.0
    %937 = vmatprep.subr.mxu0 0.0
    %938 = vmatpush1.xpose.msra.mxu0 0.0
    %939 = vmatprep.subr.mxu0 0.0
    %940 = vmatpush1.xpose.msra.mxu0 0.0
    %941 = vmatprep.subr.mxu0 0.0
    %942 = vmatpush1.xpose.msra.mxu0 0.0
    %943 = vmatprep.subr.mxu0 0.0
    %944 = vmatpush1.xpose.msra.mxu0 0.0
    %945 = vmatprep.subr.mxu0 0.0
    %946 = vmatpush1.xpose.msra.mxu0 0.0
    %947 = vmatprep.subr.mxu0 0.0
    %948 = vmatpush1.xpose.msra.mxu0 0.0
    %949 = vmatprep.subr.mxu0 0.0
    %950 = vmatpush1.xpose.msra.mxu0 0.0
    %951 = vmatprep.subr.mxu0 0.0
    %952 = vmatpush1.xpose.msra.mxu0 0.0
    %953 = vmatprep.subr.mxu0 0.0
    %954 = vmatpush1.xpose.msra.mxu0 0.0
    %955 = vmatprep.subr.mxu0 0.0
    %956 = vmatpush1.xpose.msra.mxu0 0.0
    %957 = vmatprep.subr.mxu0 0.0
    %958 = vmatpush1.xpose.msra.mxu0 0.0
    %959 = vmatprep.subr.mxu0 0.0
    %960 = vmatpush1.xpose.msra.mxu0 0.0
    %961 = vmatprep.mubr.f32.mxu0 0.0
    %962 = vmatmul.mubr.f32.gmra.mrb[0].mxu0 %v883
    %v963 = vpop.f32.mrb[0].mxu0
    %v964 = vadd.f32 0.0, %v963
    %v965 = vpop.f32.mrb[0].mxu0
    %966 = vdwg.mxu0
    %v967 = vmul.f32 %v964, 0.17677669
    %v968 = vadd.f32 %v967, %v572
    %vm969 = vcmask 257024
    %v970 = vsel %vm969, %v968, -inf
    %971 = vmax.xlane.f32.xlu0 %v970
    %v972 = vpop.xlane.xlu0 %971
    %v973 = vsub.f32 %v968, %v972
    %v974 = vmul.f32 %v973, 1.442695
    %v975 = vpow.pop %v974
    %v976 = vsel %vm969, %v975, 0.0
    %977 = vadd.xlane.f32.xlu0 %v976
    %v978 = vpop.xlane.xlu0 %977
    %v979 = vrcp.pop %v978
    %v980 = vmul.f32 %v975, %v979
    %v982 = vsel %vm319, %v980, 0
    %984 = vmatprep.subr.mxu0 0.0
    %985 = vmatpush1.msra.mxu0 %v864
    %986 = vmatprep.subr.mxu0 0.0
    %987 = vmatpush1.msra.mxu0 %v869
    %988 = vmatprep.subr.mxu0 0.0
    %989 = vmatpush1.msra.mxu0 %v874
    %990 = vmatprep.subr.mxu0 0.0
    %991 = vmatpush1.msra.mxu0 %v879
    %992 = vmatprep.subr.mxu0 0.0
    %993 = vmatpush1.msra.mxu0 0.0
    %994 = vmatprep.subr.mxu0 0.0
    %995 = vmatpush1.msra.mxu0 0.0
    %996 = vmatprep.subr.mxu0 0.0
    %997 = vmatpush1.msra.mxu0 0.0
    %998 = vmatprep.subr.mxu0 0.0
    %999 = vmatpush1.msra.mxu0 0.0
    %1000 = vmatprep.subr.mxu0 0.0
    %1001 = vmatpush1.msra.mxu0 0.0
    %1002 = vmatprep.subr.mxu0 0.0
    %1003 = vmatpush1.msra.mxu0 0.0
    %1004 = vmatprep.subr.mxu0 0.0
    %1005 = vmatpush1.msra.mxu0 0.0
    %1006 = vmatprep.subr.mxu0 0.0
    %1007 = vmatpush1.msra.mxu0 0.0
    %1008 = vmatprep.subr.mxu0 0.0
    %1009 = vmatpush1.msra.mxu0 0.0
    %1010 = vmatprep.subr.mxu0 0.0
    %1011 = vmatpush1.msra.mxu0 0.0
    %1012 = vmatprep.subr.mxu0 0.0
    %1013 = vmatpush1.msra.mxu0 0.0
    %1014 = vmatprep.subr.mxu0 0.0
    %1015 = vmatpush1.msra.mxu0 0.0
    %1016 = vmatprep.subr.mxu0 0.0
    %1017 = vmatpush1.msra.mxu0 0.0
    %1018 = vmatprep.subr.mxu0 0.0
    %1019 = vmatpush1.msra.mxu0 0.0
    %1020 = vmatprep.subr.mxu0 0.0
    %1021 = vmatpush1.msra.mxu0 0.0
    %1022 = vmatprep.subr.mxu0 0.0
    %1023 = vmatpush1.msra.mxu0 0.0
    %1024 = vmatprep.subr.mxu0 0.0
    %1025 = vmatpush1.msra.mxu0 0.0
    %1026 = vmatprep.subr.mxu0 0.0
    %1027 = vmatpush1.msra.mxu0 0.0
    %1028 = vmatprep.subr.mxu0 0.0
    %1029 = vmatpush1.msra.mxu0 0.0
    %1030 = vmatprep.subr.mxu0 0.0
    %1031 = vmatpush1.msra.mxu0 0.0
    %1032 = vmatprep.subr.mxu0 0.0
    %1033 = vmatpush1.msra.mxu0 0.0
    %1034 = vmatprep.subr.mxu0 0.0
    %1035 = vmatpush1.msra.mxu0 0.0
    %1036 = vmatprep.subr.mxu0 0.0
    %1037 = vmatpush1.msra.mxu0 0.0
    %1038 = vmatprep.subr.mxu0 0.0
    %1039 = vmatpush1.msra.mxu0 0.0
    %1040 = vmatprep.subr.mxu0 0.0
    %1041 = vmatpush1.msra.mxu0 0.0
    %1042 = vmatprep.subr.mxu0 0.0
    %1043 = vmatpush1.msra.mxu0 0.0
    %1044 = vmatprep.subr.mxu0 0.0
    %1045 = vmatpush1.msra.mxu0 0.0
    %1046 = vmatprep.subr.mxu0 0.0
    %1047 = vmatpush1.msra.mxu0 0.0
    %1048 = vmatprep.mubr.f32.mxu0 0.0
    %1049 = vmatmul.mubr.f32.gmra.mrb[0].mxu0 %v982
    %v1050 = vpop.f32.mrb[0].mxu0
    %v1051 = vadd.f32 0.0, %v1050
    %v1052 = vpop.f32.mrb[0].mxu0
    %1053 = vdwg.mxu0
    %1054 = vst.msk [vmem:[#allocation2] sm:$0xf] %vm969, %v1051
    %1055 = vrot.lane.b32.xlu0 %v663, 96
    %v1056 = vpop.permute.xlu0 %1055
    %1057 = vrot.lane.b32.xlu0 %v756, 96
    %v1058 = vpop.permute.xlu0 %1057
    %1059 = vrot.lane.b32.xlu0 %v761, 96
    %v1060 = vpop.permute.xlu0 %1059
    %1061 = vrot.lane.b32.xlu0 %v766, 96
    %v1062 = vpop.permute.xlu0 %1061
    %1063 = vrot.lane.b32.xlu0 %v771, 96
    %v1064 = vpop.permute.xlu0 %1063
    %v1065 = vsel %vm319, %v1056, 0
    %v1067 = vsel %vm319, %v1058, 0
    %v1069 = vsel %vm319, %v1060, 0
    %v1071 = vsel %vm319, %v1062, 0
    %v1073 = vsel %vm319, %v1064, 0
    %1075 = vmatprep.subr.mxu0 0.0
    %1076 = vmatpush1.xpose.msra.mxu0 %v1067
    %1077 = vmatprep.subr.mxu0 0.0
    %1078 = vmatpush1.xpose.msra.mxu0 %v1069
    %1079 = vmatprep.subr.mxu0 0.0
    %1080 = vmatpush1.xpose.msra.mxu0 %v1071
    %1081 = vmatprep.subr.mxu0 0.0
    %1082 = vmatpush1.xpose.msra.mxu0 %v1073
    %1083 = vmatprep.subr.mxu0 0.0
    %1084 = vmatpush1.xpose.msra.mxu0 0.0
    %1085 = vmatprep.subr.mxu0 0.0
    %1086 = vmatpush1.xpose.msra.mxu0 0.0
    %1087 = vmatprep.subr.mxu0 0.0
    %1088 = vmatpush1.xpose.msra.mxu0 0.0
    %1089 = vmatprep.subr.mxu0 0.0
    %1090 = vmatpush1.xpose.msra.mxu0 0.0
    %1091 = vmatprep.subr.mxu0 0.0
    %1092 = vmatpush1.xpose.msra.mxu0 0.0
    %1093 = vmatprep.subr.mxu0 0.0
    %1094 = vmatpush1.xpose.msra.mxu0 0.0
    %1095 = vmatprep.subr.mxu0 0.0
    %1096 = vmatpush1.xpose.msra.mxu0 0.0
    %1097 = vmatprep.subr.mxu0 0.0
    %1098 = vmatpush1.xpose.msra.mxu0 0.0
    %1099 = vmatprep.subr.mxu0 0.0
    %1100 = vmatpush1.xpose.msra.mxu0 0.0
    %1101 = vmatprep.subr.mxu0 0.0
    %1102 = vmatpush1.xpose.msra.mxu0 0.0
    %1103 = vmatprep.subr.mxu0 0.0
    %1104 = vmatpush1.xpose.msra.mxu0 0.0
    %1105 = vmatprep.subr.mxu0 0.0
    %1106 = vmatpush1.xpose.msra.mxu0 0.0
    %1107 = vmatprep.subr.mxu0 0.0
    %1108 = vmatpush1.xpose.msra.mxu0 0.0
    %1109 = vmatprep.subr.mxu0 0.0
    %1110 = vmatpush1.xpose.msra.mxu0 0.0
    %1111 = vmatprep.subr.mxu0 0.0
    %1112 = vmatpush1.xpose.msra.mxu0 0.0
    %1113 = vmatprep.subr.mxu0 0.0
    %1114 = vmatpush1.xpose.msra.mxu0 0.0
    %1115 = vmatprep.subr.mxu0 0.0
    %1116 = vmatpush1.xpose.msra.mxu0 0.0
    %1117 = vmatprep.subr.mxu0 0.0
    %1118 = vmatpush1.xpose.msra.mxu0 0.0
    %1119 = vmatprep.subr.mxu0 0.0
    %1120 = vmatpush1.xpose.msra.mxu0 0.0
    %1121 = vmatprep.subr.mxu0 0.0
    %1122 = vmatpush1.xpose.msra.mxu0 0.0
    %1123 = vmatprep.subr.mxu0 0.0
    %1124 = vmatpush1.xpose.msra.mxu0 0.0
    %1125 = vmatprep.subr.mxu0 0.0
    %1126 = vmatpush1.xpose.msra.mxu0 0.0
    %1127 = vmatprep.subr.mxu0 0.0
    %1128 = vmatpush1.xpose.msra.mxu0 0.0
    %1129 = vmatprep.subr.mxu0 0.0
    %1130 = vmatpush1.xpose.msra.mxu0 0.0
    %1131 = vmatprep.subr.mxu0 0.0
    %1132 = vmatpush1.xpose.msra.mxu0 0.0
    %1133 = vmatprep.subr.mxu0 0.0
    %1134 = vmatpush1.xpose.msra.mxu0 0.0
    %1135 = vmatprep.subr.mxu0 0.0
    %1136 = vmatpush1.xpose.msra.mxu0 0.0
    %1137 = vmatprep.subr.mxu0 0.0
    %1138 = vmatpush1.xpose.msra.mxu0 0.0
    %1139 = vmatprep.mubr.f32.mxu0 0.0
    %1140 = vmatmul.mubr.f32.gmra.mrb[0].mxu0 %v1065
    %v1141 = vpop.f32.mrb[0].mxu0
    %v1142 = vadd.f32 0.0, %v1141
    %v1143 = vpop.f32.mrb[0].mxu0
    %1144 = vdwg.mxu0
    %v1145 = vmul.f32 %v1142, 0.17677669
    %v1146 = vadd.f32 %v1145, %v572
    %v1147 = vsel %vm969, %v1146, -inf
    %1148 = vmax.xlane.f32.xlu0 %v1147
    %v1149 = vpop.xlane.xlu0 %1148
    %v1150 = vsub.f32 %v1146, %v1149
    %v1151 = vmul.f32 %v1150, 1.442695
    %v1152 = vpow.pop %v1151
    %v1153 = vsel %vm969, %v1152, 0.0
    %1154 = vadd.xlane.f32.xlu0 %v1153
    %v1155 = vpop.xlane.xlu0 %1154
    %v1156 = vrcp.pop %v1155
    %v1157 = vmul.f32 %v1152, %v1156
    %1162 = vrot.lane.b32.xlu0 %v864, 96
    %v1163 = vpop.permute.xlu0 %1162
    %1164 = vrot.lane.b32.xlu0 %v869, 96
    %v1165 = vpop.permute.xlu0 %1164
    %1166 = vrot.lane.b32.xlu0 %v874, 96
    %v1167 = vpop.permute.xlu0 %1166
    %1168 = vrot.lane.b32.xlu0 %v879, 96
    %v1169 = vpop.permute.xlu0 %1168
    %v1175 = vsel %vm319, %v1157, 0
    %1177 = vmatprep.subr.mxu0 0.0
    %1178 = vmatpush1.msra.mxu0 %v1163
    %1179 = vmatprep.subr.mxu0 0.0
    %1180 = vmatpush1.msra.mxu0 %v1165
    %1181 = vmatprep.subr.mxu0 0.0
    %1182 = vmatpush1.msra.mxu0 %v1167
    %1183 = vmatprep.subr.mxu0 0.0
    %1184 = vmatpush1.msra.mxu0 %v1169
    %1185 = vmatprep.subr.mxu0 0.0
    %1186 = vmatpush1.msra.mxu0 0.0
    %1187 = vmatprep.subr.mxu0 0.0
    %1188 = vmatpush1.msra.mxu0 0.0
    %1189 = vmatprep.subr.mxu0 0.0
    %1190 = vmatpush1.msra.mxu0 0.0
    %1191 = vmatprep.subr.mxu0 0.0
    %1192 = vmatpush1.msra.mxu0 0.0
    %1193 = vmatprep.subr.mxu0 0.0
    %1194 = vmatpush1.msra.mxu0 0.0
    %1195 = vmatprep.subr.mxu0 0.0
    %1196 = vmatpush1.msra.mxu0 0.0
    %1197 = vmatprep.subr.mxu0 0.0
    %1198 = vmatpush1.msra.mxu0 0.0
    %1199 = vmatprep.subr.mxu0 0.0
    %1200 = vmatpush1.msra.mxu0 0.0
    %1201 = vmatprep.subr.mxu0 0.0
    %1202 = vmatpush1.msra.mxu0 0.0
    %1203 = vmatprep.subr.mxu0 0.0
    %1204 = vmatpush1.msra.mxu0 0.0
    %1205 = vmatprep.subr.mxu0 0.0
    %1206 = vmatpush1.msra.mxu0 0.0
    %1207 = vmatprep.subr.mxu0 0.0
    %1208 = vmatpush1.msra.mxu0 0.0
    %1209 = vmatprep.subr.mxu0 0.0
    %1210 = vmatpush1.msra.mxu0 0.0
    %1211 = vmatprep.subr.mxu0 0.0
    %1212 = vmatpush1.msra.mxu0 0.0
    %1213 = vmatprep.subr.mxu0 0.0
    %1214 = vmatpush1.msra.mxu0 0.0
    %1215 = vmatprep.subr.mxu0 0.0
    %1216 = vmatpush1.msra.mxu0 0.0
    %1217 = vmatprep.subr.mxu0 0.0
    %1218 = vmatpush1.msra.mxu0 0.0
    %1219 = vmatprep.subr.mxu0 0.0
    %1220 = vmatpush1.msra.mxu0 0.0
    %1221 = vmatprep.subr.mxu0 0.0
    %1222 = vmatpush1.msra.mxu0 0.0
    %1223 = vmatprep.subr.mxu0 0.0
    %1224 = vmatpush1.msra.mxu0 0.0
    %1225 = vmatprep.subr.mxu0 0.0
    %1226 = vmatpush1.msra.mxu0 0.0
    %1227 = vmatprep.subr.mxu0 0.0
    %1228 = vmatpush1.msra.mxu0 0.0
    %1229 = vmatprep.subr.mxu0 0.0
    %1230 = vmatpush1.msra.mxu0 0.0
    %1231 = vmatprep.subr.mxu0 0.0
    %1232 = vmatpush1.msra.mxu0 0.0
    %1233 = vmatprep.subr.mxu0 0.0
    %1234 = vmatpush1.msra.mxu0 0.0
    %1235 = vmatprep.subr.mxu0 0.0
    %1236 = vmatpush1.msra.mxu0 0.0
    %1237 = vmatprep.subr.mxu0 0.0
    %1238 = vmatpush1.msra.mxu0 0.0
    %1239 = vmatprep.subr.mxu0 0.0
    %1240 = vmatpush1.msra.mxu0 0.0
    %1241 = vmatprep.mubr.f32.mxu0 0.0
    %1242 = vmatmul.mubr.f32.gmra.mrb[0].mxu0 %v1175
    %v1243 = vpop.f32.mrb[0].mxu0
    %v1244 = vadd.f32 0.0, %v1243
    %v1245 = vpop.f32.mrb[0].mxu0
    %1246 = vdwg.mxu0
    %1248 = vrot.lane.b32.xlu0 %v1244, 32
    %v1249 = vpop.permute.xlu0 %1248
    %vm1251 = vcmask 519424
    %1252 = vst.msk [vmem:[#allocation2] sm:$0xf] %vm1251, %v1249
    %1253 = vrot.lane.b32.xlu0 %v663, 64
    %v1254 = vpop.permute.xlu0 %1253
    %1255 = vrot.lane.b32.xlu0 %v756, 64
    %v1256 = vpop.permute.xlu0 %1255
    %1257 = vrot.lane.b32.xlu0 %v761, 64
    %v1258 = vpop.permute.xlu0 %1257
    %1259 = vrot.lane.b32.xlu0 %v766, 64
    %v1260 = vpop.permute.xlu0 %1259
    %1261 = vrot.lane.b32.xlu0 %v771, 64
    %v1262 = vpop.permute.xlu0 %1261
    %v1263 = vsel %vm319, %v1254, 0
    %v1265 = vsel %vm319, %v1256, 0
    %v1267 = vsel %vm319, %v1258, 0
    %v1269 = vsel %vm319, %v1260, 0
    %v1271 = vsel %vm319, %v1262, 0
    %1273 = vmatprep.subr.mxu0 0.0
    %1274 = vmatpush1.xpose.msra.mxu0 %v1265
    %1275 = vmatprep.subr.mxu0 0.0
    %1276 = vmatpush1.xpose.msra.mxu0 %v1267
    %1277 = vmatprep.subr.mxu0 0.0
    %1278 = vmatpush1.xpose.msra.mxu0 %v1269
    %1279 = vmatprep.subr.mxu0 0.0
    %1280 = vmatpush1.xpose.msra.mxu0 %v1271
    %1281 = vmatprep.subr.mxu0 0.0
    %1282 = vmatpush1.xpose.msra.mxu0 0.0
    %1283 = vmatprep.subr.mxu0 0.0
    %1284 = vmatpush1.xpose.msra.mxu0 0.0
    %1285 = vmatprep.subr.mxu0 0.0
    %1286 = vmatpush1.xpose.msra.mxu0 0.0
    %1287 = vmatprep.subr.mxu0 0.0
    %1288 = vmatpush1.xpose.msra.mxu0 0.0
    %1289 = vmatprep.subr.mxu0 0.0
    %1290 = vmatpush1.xpose.msra.mxu0 0.0
    %1291 = vmatprep.subr.mxu0 0.0
    %1292 = vmatpush1.xpose.msra.mxu0 0.0
    %1293 = vmatprep.subr.mxu0 0.0
    %1294 = vmatpush1.xpose.msra.mxu0 0.0
    %1295 = vmatprep.subr.mxu0 0.0
    %1296 = vmatpush1.xpose.msra.mxu0 0.0
    %1297 = vmatprep.subr.mxu0 0.0
    %1298 = vmatpush1.xpose.msra.mxu0 0.0
    %1299 = vmatprep.subr.mxu0 0.0
    %1300 = vmatpush1.xpose.msra.mxu0 0.0
    %1301 = vmatprep.subr.mxu0 0.0
    %1302 = vmatpush1.xpose.msra.mxu0 0.0
    %1303 = vmatprep.subr.mxu0 0.0
    %1304 = vmatpush1.xpose.msra.mxu0 0.0
    %1305 = vmatprep.subr.mxu0 0.0
    %1306 = vmatpush1.xpose.msra.mxu0 0.0
    %1307 = vmatprep.subr.mxu0 0.0
    %1308 = vmatpush1.xpose.msra.mxu0 0.0
    %1309 = vmatprep.subr.mxu0 0.0
    %1310 = vmatpush1.xpose.msra.mxu0 0.0
    %1311 = vmatprep.subr.mxu0 0.0
    %1312 = vmatpush1.xpose.msra.mxu0 0.0
    %1313 = vmatprep.subr.mxu0 0.0
    %1314 = vmatpush1.xpose.msra.mxu0 0.0
    %1315 = vmatprep.subr.mxu0 0.0
    %1316 = vmatpush1.xpose.msra.mxu0 0.0
    %1317 = vmatprep.subr.mxu0 0.0
    %1318 = vmatpush1.xpose.msra.mxu0 0.0
    %1319 = vmatprep.subr.mxu0 0.0
    %1320 = vmatpush1.xpose.msra.mxu0 0.0
    %1321 = vmatprep.subr.mxu0 0.0
    %1322 = vmatpush1.xpose.msra.mxu0 0.0
    %1323 = vmatprep.subr.mxu0 0.0
    %1324 = vmatpush1.xpose.msra.mxu0 0.0
    %1325 = vmatprep.subr.mxu0 0.0
    %1326 = vmatpush1.xpose.msra.mxu0 0.0
    %1327 = vmatprep.subr.mxu0 0.0
    %1328 = vmatpush1.xpose.msra.mxu0 0.0
    %1329 = vmatprep.subr.mxu0 0.0
    %1330 = vmatpush1.xpose.msra.mxu0 0.0
    %1331 = vmatprep.subr.mxu0 0.0
    %1332 = vmatpush1.xpose.msra.mxu0 0.0
    %1333 = vmatprep.subr.mxu0 0.0
    %1334 = vmatpush1.xpose.msra.mxu0 0.0
    %1335 = vmatprep.subr.mxu0 0.0
    %1336 = vmatpush1.xpose.msra.mxu0 0.0
    %1337 = vmatprep.mubr.f32.mxu0 0.0
    %1338 = vmatmul.mubr.f32.gmra.mrb[0].mxu0 %v1263
    %v1339 = vpop.f32.mrb[0].mxu0
    %v1340 = vadd.f32 0.0, %v1339
    %v1341 = vpop.f32.mrb[0].mxu0
    %1342 = vdwg.mxu0
    %v1343 = vmul.f32 %v1340, 0.17677669
    %v1344 = vadd.f32 %v1343, %v572
    %v1345 = vsel %vm969, %v1344, -inf
    %1346 = vmax.xlane.f32.xlu0 %v1345
    %v1347 = vpop.xlane.xlu0 %1346
    %v1348 = vsub.f32 %v1344, %v1347
    %v1349 = vmul.f32 %v1348, 1.442695
    %v1350 = vpow.pop %v1349
    %v1351 = vsel %vm969, %v1350, 0.0
    %1352 = vadd.xlane.f32.xlu0 %v1351
    %v1353 = vpop.xlane.xlu0 %1352
    %v1354 = vrcp.pop %v1353
    %v1355 = vmul.f32 %v1350, %v1354
    %1356 = vrot.lane.b32.xlu0 %v864, 64
    %v1357 = vpop.permute.xlu0 %1356
    %1358 = vrot.lane.b32.xlu0 %v869, 64
    %v1359 = vpop.permute.xlu0 %1358
    %1360 = vrot.lane.b32.xlu0 %v874, 64
    %v1361 = vpop.permute.xlu0 %1360
    %1362 = vrot.lane.b32.xlu0 %v879, 64
    %v1363 = vpop.permute.xlu0 %1362
    %v1369 = vsel %vm319, %v1355, 0
    %1371 = vmatprep.subr.mxu0 0.0
    %1372 = vmatpush1.msra.mxu0 %v1357
    %1373 = vmatprep.subr.mxu0 0.0
    %1374 = vmatpush1.msra.mxu0 %v1359
    %1375 = vmatprep.subr.mxu0 0.0
    %1376 = vmatpush1.msra.mxu0 %v1361
    %1377 = vmatprep.subr.mxu0 0.0
    %1378 = vmatpush1.msra.mxu0 %v1363
    %1379 = vmatprep.subr.mxu0 0.0
    %1380 = vmatpush1.msra.mxu0 0.0
    %1381 = vmatprep.subr.mxu0 0.0
    %1382 = vmatpush1.msra.mxu0 0.0
    %1383 = vmatprep.subr.mxu0 0.0
    %1384 = vmatpush1.msra.mxu0 0.0
    %1385 = vmatprep.subr.mxu0 0.0
    %1386 = vmatpush1.msra.mxu0 0.0
    %1387 = vmatprep.subr.mxu0 0.0
    %1388 = vmatpush1.msra.mxu0 0.0
    %1389 = vmatprep.subr.mxu0 0.0
    %1390 = vmatpush1.msra.mxu0 0.0
    %1391 = vmatprep.subr.mxu0 0.0
    %1392 = vmatpush1.msra.mxu0 0.0
    %1393 = vmatprep.subr.mxu0 0.0
    %1394 = vmatpush1.msra.mxu0 0.0
    %1395 = vmatprep.subr.mxu0 0.0
    %1396 = vmatpush1.msra.mxu0 0.0
    %1397 = vmatprep.subr.mxu0 0.0
    %1398 = vmatpush1.msra.mxu0 0.0
    %1399 = vmatprep.subr.mxu0 0.0
    %1400 = vmatpush1.msra.mxu0 0.0
    %1401 = vmatprep.subr.mxu0 0.0
    %1402 = vmatpush1.msra.mxu0 0.0
    %1403 = vmatprep.subr.mxu0 0.0
    %1404 = vmatpush1.msra.mxu0 0.0
    %1405 = vmatprep.subr.mxu0 0.0
    %1406 = vmatpush1.msra.mxu0 0.0
    %1407 = vmatprep.subr.mxu0 0.0
    %1408 = vmatpush1.msra.mxu0 0.0
    %1409 = vmatprep.subr.mxu0 0.0
    %1410 = vmatpush1.msra.mxu0 0.0
    %1411 = vmatprep.subr.mxu0 0.0
    %1412 = vmatpush1.msra.mxu0 0.0
    %1413 = vmatprep.subr.mxu0 0.0
    %1414 = vmatpush1.msra.mxu0 0.0
    %1415 = vmatprep.subr.mxu0 0.0
    %1416 = vmatpush1.msra.mxu0 0.0
    %1417 = vmatprep.subr.mxu0 0.0
    %1418 = vmatpush1.msra.mxu0 0.0
    %1419 = vmatprep.subr.mxu0 0.0
    %1420 = vmatpush1.msra.mxu0 0.0
    %1421 = vmatprep.subr.mxu0 0.0
    %1422 = vmatpush1.msra.mxu0 0.0
    %1423 = vmatprep.subr.mxu0 0.0
    %1424 = vmatpush1.msra.mxu0 0.0
    %1425 = vmatprep.subr.mxu0 0.0
    %1426 = vmatpush1.msra.mxu0 0.0
    %1427 = vmatprep.subr.mxu0 0.0
    %1428 = vmatpush1.msra.mxu0 0.0
    %1429 = vmatprep.subr.mxu0 0.0
    %1430 = vmatpush1.msra.mxu0 0.0
    %1431 = vmatprep.subr.mxu0 0.0
    %1432 = vmatpush1.msra.mxu0 0.0
    %1433 = vmatprep.subr.mxu0 0.0
    %1434 = vmatpush1.msra.mxu0 0.0
    %1435 = vmatprep.mubr.f32.mxu0 0.0
    %1436 = vmatmul.mubr.f32.gmra.mrb[0].mxu0 %v1369
    %v1437 = vpop.f32.mrb[0].mxu0
    %v1438 = vadd.f32 0.0, %v1437
    %v1439 = vpop.f32.mrb[0].mxu0
    %1440 = vdwg.mxu0
    %1442 = vrot.lane.b32.xlu0 %v1438, 64
    %v1443 = vpop.permute.xlu0 %1442
    %vm1445 = vcmask 781824
    %1446 = vst.msk [vmem:[#allocation2] sm:$0xf] %vm1445, %v1443
    %1447 = vrot.lane.b32.xlu0 %v663, 32
    %v1448 = vpop.permute.xlu0 %1447
    %1449 = vrot.lane.b32.xlu0 %v756, 32
    %v1450 = vpop.permute.xlu0 %1449
    %1451 = vrot.lane.b32.xlu0 %v761, 32
    %v1452 = vpop.permute.xlu0 %1451
    %1453 = vrot.lane.b32.xlu0 %v766, 32
    %v1454 = vpop.permute.xlu0 %1453
    %1455 = vrot.lane.b32.xlu0 %v771, 32
    %v1456 = vpop.permute.xlu0 %1455
    %v1457 = vsel %vm319, %v1448, 0
    %v1459 = vsel %vm319, %v1450, 0
    %v1461 = vsel %vm319, %v1452, 0
    %v1463 = vsel %vm319, %v1454, 0
    %v1465 = vsel %vm319, %v1456, 0
    %1467 = vmatprep.subr.mxu0 0.0
    %1468 = vmatpush1.xpose.msra.mxu0 %v1459
    %1469 = vmatprep.subr.mxu0 0.0
    %1470 = vmatpush1.xpose.msra.mxu0 %v1461
    %1471 = vmatprep.subr.mxu0 0.0
    %1472 = vmatpush1.xpose.msra.mxu0 %v1463
    %1473 = vmatprep.subr.mxu0 0.0
    %1474 = vmatpush1.xpose.msra.mxu0 %v1465
    %1475 = vmatprep.subr.mxu0 0.0
    %1476 = vmatpush1.xpose.msra.mxu0 0.0
    %1477 = vmatprep.subr.mxu0 0.0
    %1478 = vmatpush1.xpose.msra.mxu0 0.0
    %1479 = vmatprep.subr.mxu0 0.0
    %1480 = vmatpush1.xpose.msra.mxu0 0.0
    %1481 = vmatprep.subr.mxu0 0.0
    %1482 = vmatpush1.xpose.msra.mxu0 0.0
    %1483 = vmatprep.subr.mxu0 0.0
    %1484 = vmatpush1.xpose.msra.mxu0 0.0
    %1485 = vmatprep.subr.mxu0 0.0
    %1486 = vmatpush1.xpose.msra.mxu0 0.0
    %1487 = vmatprep.subr.mxu0 0.0
    %1488 = vmatpush1.xpose.msra.mxu0 0.0
    %1489 = vmatprep.subr.mxu0 0.0
    %1490 = vmatpush1.xpose.msra.mxu0 0.0
    %1491 = vmatprep.subr.mxu0 0.0
    %1492 = vmatpush1.xpose.msra.mxu0 0.0
    %1493 = vmatprep.subr.mxu0 0.0
    %1494 = vmatpush1.xpose.msra.mxu0 0.0
    %1495 = vmatprep.subr.mxu0 0.0
    %1496 = vmatpush1.xpose.msra.mxu0 0.0
    %1497 = vmatprep.subr.mxu0 0.0
    %1498 = vmatpush1.xpose.msra.mxu0 0.0
    %1499 = vmatprep.subr.mxu0 0.0
    %1500 = vmatpush1.xpose.msra.mxu0 0.0
    %1501 = vmatprep.subr.mxu0 0.0
    %1502 = vmatpush1.xpose.msra.mxu0 0.0
    %1503 = vmatprep.subr.mxu0 0.0
    %1504 = vmatpush1.xpose.msra.mxu0 0.0
    %1505 = vmatprep.subr.mxu0 0.0
    %1506 = vmatpush1.xpose.msra.mxu0 0.0
    %1507 = vmatprep.subr.mxu0 0.0
    %1508 = vmatpush1.xpose.msra.mxu0 0.0
    %1509 = vmatprep.subr.mxu0 0.0
    %1510 = vmatpush1.xpose.msra.mxu0 0.0
    %1511 = vmatprep.subr.mxu0 0.0
    %1512 = vmatpush1.xpose.msra.mxu0 0.0
    %1513 = vmatprep.subr.mxu0 0.0
    %1514 = vmatpush1.xpose.msra.mxu0 0.0
    %1515 = vmatprep.subr.mxu0 0.0
    %1516 = vmatpush1.xpose.msra.mxu0 0.0
    %1517 = vmatprep.subr.mxu0 0.0
    %1518 = vmatpush1.xpose.msra.mxu0 0.0
    %1519 = vmatprep.subr.mxu0 0.0
    %1520 = vmatpush1.xpose.msra.mxu0 0.0
    %1521 = vmatprep.subr.mxu0 0.0
    %1522 = vmatpush1.xpose.msra.mxu0 0.0
    %1523 = vmatprep.subr.mxu0 0.0
    %1524 = vmatpush1.xpose.msra.mxu0 0.0
    %1525 = vmatprep.subr.mxu0 0.0
    %1526 = vmatpush1.xpose.msra.mxu0 0.0
    %1527 = vmatprep.subr.mxu0 0.0
    %1528 = vmatpush1.xpose.msra.mxu0 0.0
    %1529 = vmatprep.subr.mxu0 0.0
    %1530 = vmatpush1.xpose.msra.mxu0 0.0
    %1531 = vmatprep.mubr.f32.mxu0 0.0
    %1532 = vmatmul.mubr.f32.gmra.mrb[0].mxu0 %v1457
    %v1533 = vpop.f32.mrb[0].mxu0
    %v1534 = vadd.f32 0.0, %v1533
    %v1535 = vpop.f32.mrb[0].mxu0
    %1536 = vdwg.mxu0
    %v1537 = vmul.f32 %v1534, 0.17677669
    %v1538 = vadd.f32 %v1537, %v572
    %v1539 = vsel %vm969, %v1538, -inf
    %1540 = vmax.xlane.f32.xlu0 %v1539
    %v1541 = vpop.xlane.xlu0 %1540
    %v1542 = vsub.f32 %v1538, %v1541
    %v1543 = vmul.f32 %v1542, 1.442695
    %v1544 = vpow.pop %v1543
    %v1545 = vsel %vm969, %v1544, 0.0
    %1546 = vadd.xlane.f32.xlu0 %v1545
    %v1547 = vpop.xlane.xlu0 %1546
    %v1548 = vrcp.pop %v1547
    %v1549 = vmul.f32 %v1544, %v1548
    %1550 = vrot.lane.b32.xlu0 %v864, 32
    %v1551 = vpop.permute.xlu0 %1550
    %1552 = vrot.lane.b32.xlu0 %v869, 32
    %v1553 = vpop.permute.xlu0 %1552
    %1554 = vrot.lane.b32.xlu0 %v874, 32
    %v1555 = vpop.permute.xlu0 %1554
    %1556 = vrot.lane.b32.xlu0 %v879, 32
    %v1557 = vpop.permute.xlu0 %1556
    %v1563 = vsel %vm319, %v1549, 0
    %1565 = vmatprep.subr.mxu0 0.0
    %1566 = vmatpush1.msra.mxu0 %v1551
    %1567 = vmatprep.subr.mxu0 0.0
    %1568 = vmatpush1.msra.mxu0 %v1553
    %1569 = vmatprep.subr.mxu0 0.0
    %1570 = vmatpush1.msra.mxu0 %v1555
    %1571 = vmatprep.subr.mxu0 0.0
    %1572 = vmatpush1.msra.mxu0 %v1557
    %1573 = vmatprep.subr.mxu0 0.0
    %1574 = vmatpush1.msra.mxu0 0.0
    %1575 = vmatprep.subr.mxu0 0.0
    %1576 = vmatpush1.msra.mxu0 0.0
    %1577 = vmatprep.subr.mxu0 0.0
    %1578 = vmatpush1.msra.mxu0 0.0
    %1579 = vmatprep.subr.mxu0 0.0
    %1580 = vmatpush1.msra.mxu0 0.0
    %1581 = vmatprep.subr.mxu0 0.0
    %1582 = vmatpush1.msra.mxu0 0.0
    %1583 = vmatprep.subr.mxu0 0.0
    %1584 = vmatpush1.msra.mxu0 0.0
    %1585 = vmatprep.subr.mxu0 0.0
    %1586 = vmatpush1.msra.mxu0 0.0
    %1587 = vmatprep.subr.mxu0 0.0
    %1588 = vmatpush1.msra.mxu0 0.0
    %1589 = vmatprep.subr.mxu0 0.0
    %1590 = vmatpush1.msra.mxu0 0.0
    %1591 = vmatprep.subr.mxu0 0.0
    %1592 = vmatpush1.msra.mxu0 0.0
    %1593 = vmatprep.subr.mxu0 0.0
    %1594 = vmatpush1.msra.mxu0 0.0
    %1595 = vmatprep.subr.mxu0 0.0
    %1596 = vmatpush1.msra.mxu0 0.0
    %1597 = vmatprep.subr.mxu0 0.0
    %1598 = vmatpush1.msra.mxu0 0.0
    %1599 = vmatprep.subr.mxu0 0.0
    %1600 = vmatpush1.msra.mxu0 0.0
    %1601 = vmatprep.subr.mxu0 0.0
    %1602 = vmatpush1.msra.mxu0 0.0
    %1603 = vmatprep.subr.mxu0 0.0
    %1604 = vmatpush1.msra.mxu0 0.0
    %1605 = vmatprep.subr.mxu0 0.0
    %1606 = vmatpush1.msra.mxu0 0.0
    %1607 = vmatprep.subr.mxu0 0.0
    %1608 = vmatpush1.msra.mxu0 0.0
    %1609 = vmatprep.subr.mxu0 0.0
    %1610 = vmatpush1.msra.mxu0 0.0
    %1611 = vmatprep.subr.mxu0 0.0
    %1612 = vmatpush1.msra.mxu0 0.0
    %1613 = vmatprep.subr.mxu0 0.0
    %1614 = vmatpush1.msra.mxu0 0.0
    %1615 = vmatprep.subr.mxu0 0.0
    %1616 = vmatpush1.msra.mxu0 0.0
    %1617 = vmatprep.subr.mxu0 0.0
    %1618 = vmatpush1.msra.mxu0 0.0
    %1619 = vmatprep.subr.mxu0 0.0
    %1620 = vmatpush1.msra.mxu0 0.0
    %1621 = vmatprep.subr.mxu0 0.0
    %1622 = vmatpush1.msra.mxu0 0.0
    %1623 = vmatprep.subr.mxu0 0.0
    %1624 = vmatpush1.msra.mxu0 0.0
    %1625 = vmatprep.subr.mxu0 0.0
    %1626 = vmatpush1.msra.mxu0 0.0
    %1627 = vmatprep.subr.mxu0 0.0
    %1628 = vmatpush1.msra.mxu0 0.0
    %1629 = vmatprep.mubr.f32.mxu0 0.0
    %1630 = vmatmul.mubr.f32.gmra.mrb[0].mxu0 %v1563
    %v1631 = vpop.f32.mrb[0].mxu0
    %v1632 = vadd.f32 0.0, %v1631
    %v1633 = vpop.f32.mrb[0].mxu0
    %1634 = vdwg.mxu0
    %1636 = vrot.lane.b32.xlu0 %v1632, 96
    %v1637 = vpop.permute.xlu0 %1636
    %vm1639 = vcmask 1044224
    %1640 = vst.msk [vmem:[#allocation2] sm:$0xf] %vm1639, %v1637
    %v1641 = vld [vmem:[#allocation2] sm:$0xf]
    %v1642 = vld [vmem:[#allocation11] sm:$0xff]
    %v1643 = vld [vmem:[#allocation11 + $0x8] sm:$0xff]
    %v1644 = vld [vmem:[#allocation11 + $0x10] sm:$0xff]
    %v1645 = vld [vmem:[#allocation11 + $0x18] sm:$0xff]
    %v1646 = vld [vmem:[#allocation11 + $0x20] sm:$0xff]
    %v1647 = vld [vmem:[#allocation11 + $0x28] sm:$0xff]
    %v1648 = vld [vmem:[#allocation11 + $0x30] sm:$0xff]
    %v1649 = vld [vmem:[#allocation11 + $0x38] sm:$0xff]
    %v1650 = vld [vmem:[#allocation11 + $0x40] sm:$0xff]
    %v1651 = vld [vmem:[#allocation11 + $0x48] sm:$0xff]
    %v1652 = vld [vmem:[#allocation11 + $0x50] sm:$0xff]
    %v1653 = vld [vmem:[#allocation11 + $0x58] sm:$0xff]
    %v1654 = vld [vmem:[#allocation11 + $0x60] sm:$0xff]
    %v1655 = vld [vmem:[#allocation11 + $0x68] sm:$0xff]
    %v1656 = vld [vmem:[#allocation11 + $0x70] sm:$0xff]
    %v1657 = vld [vmem:[#allocation11 + $0x78] sm:$0xff]
    %v1658 = vld [vmem:[%s13] sm:$0x1]
    %v1660 = vlaneseq
    %v1661 = vshrl.u32 %v1660, 7
    %v1662 = vsub.s32 0, %v1661
    %v1663 = vrot.slane %v1658, %v1662
    %1665 = vmatprep.subr.mxu0 0.0
    %1666 = vmatpush1.msra.mxu0 %v1642
    %1667 = vmatprep.subr.mxu0 0.0
    %1668 = vmatpush1.msra.mxu0 %v1643
    %1669 = vmatprep.subr.mxu0 0.0
    %1670 = vmatpush1.msra.mxu0 %v1644
    %1671 = vmatprep.subr.mxu0 0.0
    %1672 = vmatpush1.msra.mxu0 %v1645
    %1673 = vmatprep.subr.mxu0 0.0
    %1674 = vmatpush1.msra.mxu0 %v1646
    %1675 = vmatprep.subr.mxu0 0.0
    %1676 = vmatpush1.msra.mxu0 %v1647
    %1677 = vmatprep.subr.mxu0 0.0
    %1678 = vmatpush1.msra.mxu0 %v1648
    %1679 = vmatprep.subr.mxu0 0.0
    %1680 = vmatpush1.msra.mxu0 %v1649
    %1681 = vmatprep.subr.mxu0 0.0
    %1682 = vmatpush1.msra.mxu0 %v1650
    %1683 = vmatprep.subr.mxu0 0.0
    %1684 = vmatpush1.msra.mxu0 %v1651
    %1685 = vmatprep.subr.mxu0 0.0
    %1686 = vmatpush1.msra.mxu0 %v1652
    %1687 = vmatprep.subr.mxu0 0.0
    %1688 = vmatpush1.msra.mxu0 %v1653
    %1689 = vmatprep.subr.mxu0 0.0
    %1690 = vmatpush1.msra.mxu0 %v1654
    %1691 = vmatprep.subr.mxu0 0.0
    %1692 = vmatpush1.msra.mxu0 %v1655
    %1693 = vmatprep.subr.mxu0 0.0
    %1694 = vmatpush1.msra.mxu0 %v1656
    %1695 = vmatprep.subr.mxu0 0.0
    %1696 = vmatpush1.msra.mxu0 %v1657
    %1697 = vmatprep.subr.mxu0 0.0
    %1698 = vmatpush1.msra.mxu0 0.0
    %1699 = vmatprep.subr.mxu0 0.0
    %1700 = vmatpush1.msra.mxu0 0.0
    %1701 = vmatprep.subr.mxu0 0.0
    %1702 = vmatpush1.msra.mxu0 0.0
    %1703 = vmatprep.subr.mxu0 0.0
    %1704 = vmatpush1.msra.mxu0 0.0
    %1705 = vmatprep.subr.mxu0 0.0
    %1706 = vmatpush1.msra.mxu0 0.0
    %1707 = vmatprep.subr.mxu0 0.0
    %1708 = vmatpush1.msra.mxu0 0.0
    %1709 = vmatprep.subr.mxu0 0.0
    %1710 = vmatpush1.msra.mxu0 0.0
    %1711 = vmatprep.subr.mxu0 0.0
    %1712 = vmatpush1.msra.mxu0 0.0
    %1713 = vmatprep.subr.mxu0 0.0
    %1714 = vmatpush1.msra.mxu0 0.0
    %1715 = vmatprep.subr.mxu0 0.0
    %1716 = vmatpush1.msra.mxu0 0.0
    %1717 = vmatprep.subr.mxu0 0.0
    %1718 = vmatpush1.msra.mxu0 0.0
    %1719 = vmatprep.subr.mxu0 0.0
    %1720 = vmatpush1.msra.mxu0 0.0
    %1721 = vmatprep.subr.mxu0 0.0
    %1722 = vmatpush1.msra.mxu0 0.0
    %1723 = vmatprep.subr.mxu0 0.0
    %1724 = vmatpush1.msra.mxu0 0.0
    %1725 = vmatprep.subr.mxu0 0.0
    %1726 = vmatpush1.msra.mxu0 0.0
    %1727 = vmatprep.subr.mxu0 0.0
    %1728 = vmatpush1.msra.mxu0 0.0
    %1729 = vmatprep.mubr.f32.mxu0 0.0
    %1730 = vmatmul.mubr.f32.gmra.mrb[0].mxu0 %v1641
    %v1731 = vpop.f32.mrb[0].mxu0
    %v1732 = vadd.f32 %v1663, %v1731
    %v1733 = vpop.f32.mrb[0].mxu0
    %1734 = vdwg.mxu0
    %v1735 = vadd.f32 %v558, %v1732
    %v1736 = vld [vmem:[%s14] sm:$0x1]
    %v1737 = vld [vmem:[%s15] sm:$0x1]
    %vm1738 = vcmask 1043456
    %v1739 = vsel %vm1738, %v1735, 0.0
    %1740 = vadd.xlane.f32.xlu0 %v1739
    %v1741 = vpop.xlane.xlu0 %1740
    %v1742 = vmul.f32 %v1741, %v427
    %v1743 = vsub.f32 %v1735, %v1742
    %v1744 = vmul.f32 %v1743, %v1743
    %v1745 = vsel %vm1738, %v1744, 0.0
    %1746 = vadd.xlane.f32.xlu0 %v1745
    %v1747 = vpop.xlane.xlu0 %1746
    %v1748 = vmul.f32 %v1747, %v427
    %v1749 = vadd.f32 %v1748, 1e-12
    %v1750 = vrsqrt.pop %v1749
    %v1751 = vmul.f32 %v1743, %v1750
    %v1753 = vlaneseq
    %v1754 = vshrl.u32 %v1753, 7
    %v1755 = vsub.s32 0, %v1754
    %v1756 = vrot.slane %v1736, %v1755
    %v1758 = vmul.f32 %v1751, %v1756
    %v1760 = vlaneseq
    %v1761 = vshrl.u32 %v1760, 7
    %v1762 = vsub.s32 0, %v1761
    %v1763 = vrot.slane %v1737, %v1762
    %v1765 = vadd.f32 %v1758, %v1763
    %v1766 = vld [vmem:[#allocation12] sm:$0xff]
    %v1767 = vld [vmem:[#allocation12 + $0x8] sm:$0xff]
    %v1768 = vld [vmem:[#allocation12 + $0x10] sm:$0xff]
    %v1769 = vld [vmem:[#allocation12 + $0x18] sm:$0xff]
    %v1770 = vld [vmem:[#allocation12 + $0x20] sm:$0xff]
    %v1771 = vld [vmem:[#allocation12 + $0x28] sm:$0xff]
    %v1772 = vld [vmem:[#allocation12 + $0x30] sm:$0xff]
    %v1773 = vld [vmem:[#allocation12 + $0x38] sm:$0xff]
    %v1774 = vld [vmem:[#allocation12 + $0x40] sm:$0xff]
    %v1775 = vld [vmem:[#allocation12 + $0x48] sm:$0xff]
    %v1776 = vld [vmem:[#allocation12 + $0x50] sm:$0xff]
    %v1777 = vld [vmem:[#allocation12 + $0x58] sm:$0xff]
    %v1778 = vld [vmem:[#allocation12 + $0x60] sm:$0xff]
    %v1779 = vld [vmem:[#allocation12 + $0x68] sm:$0xff]
    %v1780 = vld [vmem:[#allocation12 + $0x70] sm:$0xff]
    %v1781 = vld [vmem:[#allocation12 + $0x78] sm:$0xff]
    %v1782 = vld [vmem:[#allocation12 + $0x80] sm:$0xff]
    %v1783 = vld [vmem:[#allocation12 + $0x88] sm:$0xff]
    %v1784 = vld [vmem:[#allocation12 + $0x90] sm:$0xff]
    %v1785 = vld [vmem:[#allocation12 + $0x98] sm:$0xff]
    %v1786 = vld [vmem:[#allocation12 + $0xa0] sm:$0xff]
    %v1787 = vld [vmem:[#allocation12 + $0xa8] sm:$0xff]
    %v1788 = vld [vmem:[#allocation12 + $0xb0] sm:$0xff]
    %v1789 = vld [vmem:[#allocation12 + $0xb8] sm:$0xff]
    %v1790 = vld [vmem:[#allocation12 + $0xc0] sm:$0xff]
    %v1791 = vld [vmem:[#allocation12 + $0xc8] sm:$0xff]
    %v1792 = vld [vmem:[#allocation12 + $0xd0] sm:$0xff]
    %v1793 = vld [vmem:[#allocation12 + $0xd8] sm:$0xff]
    %v1794 = vld [vmem:[#allocation12 + $0xe0] sm:$0xff]
    %v1795 = vld [vmem:[#allocation12 + $0xe8] sm:$0xff]
    %v1796 = vld [vmem:[#allocation12 + $0xf0] sm:$0xff]
    %v1797 = vld [vmem:[#allocation12 + $0xf8] sm:$0xff]
    %v1798 = vld [vmem:[#allocation12 + $0x100] sm:$0xff]
    %v1799 = vld [vmem:[#allocation12 + $0x108] sm:$0xff]
    %v1800 = vld [vmem:[#allocation12 + $0x110] sm:$0xff]
    %v1801 = vld [vmem:[#allocation12 + $0x118] sm:$0xff]
    %v1802 = vld [vmem:[#allocation12 + $0x120] sm:$0xff]
    %v1803 = vld [vmem:[#allocation12 + $0x128] sm:$0xff]
    %v1804 = vld [vmem:[#allocation12 + $0x130] sm:$0xff]
    %v1805 = vld [vmem:[#allocation12 + $0x138] sm:$0xff]
    %v1806 = vld [vmem:[#allocation12 + $0x140] sm:$0xff]
    %v1807 = vld [vmem:[#allocation12 + $0x148] sm:$0xff]
    %v1808 = vld [vmem:[#allocation12 + $0x150] sm:$0xff]
    %v1809 = vld [vmem:[#allocation12 + $0x158] sm:$0xff]
    %v1810 = vld [vmem:[#allocation12 + $0x160] sm:$0xff]
    %v1811 = vld [vmem:[#allocation12 + $0x168] sm:$0xff]
    %v1812 = vld [vmem:[#allocation12 + $0x170] sm:$0xff]
    %v1813 = vld [vmem:[#allocation12 + $0x178] sm:$0xff]
    %v1814 = vld [vmem:[#allocation12 + $0x180] sm:$0xff]
    %v1815 = vld [vmem:[#allocation12 + $0x188] sm:$0xff]
    %v1816 = vld [vmem:[#allocation12 + $0x190] sm:$0xff]
    %v1817 = vld [vmem:[#allocation12 + $0x198] sm:$0xff]
    %v1818 = vld [vmem:[#allocation12 + $0x1a0] sm:$0xff]
    %v1819 = vld [vmem:[#allocation12 + $0x1a8] sm:$0xff]
    %v1820 = vld [vmem:[#allocation12 + $0x1b0] sm:$0xff]
    %v1821 = vld [vmem:[#allocation12 + $0x1b8] sm:$0xff]
    %v1822 = vld [vmem:[#allocation12 + $0x1c0] sm:$0xff]
    %v1823 = vld [vmem:[#allocation12 + $0x1c8] sm:$0xff]
    %v1824 = vld [vmem:[#allocation12 + $0x1d0] sm:$0xff]
    %v1825 = vld [vmem:[#allocation12 + $0x1d8] sm:$0xff]
    %v1826 = vld [vmem:[#allocation12 + $0x1e0] sm:$0xff]
    %v1827 = vld [vmem:[#allocation12 + $0x1e8] sm:$0xff]
    %v1828 = vld [vmem:[#allocation12 + $0x1f0] sm:$0xff]
    %v1829 = vld [vmem:[#allocation12 + $0x1f8] sm:$0xff]
    %v1830 = vld [vmem:[%s17] sm:$0xf]
    %v1832 = vlaneseq
    %v1833 = vshrl.u32 %v1832, 7
    %v1834 = vsub.s32 0, %v1833
    %v1835 = vrot.slane %v1830, %v1834
    %v1836 = vlaneseq
    %v1837 = vshrl.u32 %v1836, 7
    %v1838 = vsub.s32 1, %v1837
    %v1839 = vrot.slane %v1830, %v1838
    %v1840 = vlaneseq
    %v1841 = vshrl.u32 %v1840, 7
    %v1842 = vsub.s32 2, %v1841
    %v1843 = vrot.slane %v1830, %v1842
    %v1844 = vlaneseq
    %v1845 = vshrl.u32 %v1844, 7
    %v1846 = vsub.s32 3, %v1845
    %v1847 = vrot.slane %v1830, %v1846
    %1852 = vmatprep.subr.mxu0 %v1767
    %1853 = vmatpush1.msra.mxu0 %v1766
    %1854 = vmatprep.subr.mxu0 %v1771
    %1855 = vmatpush1.msra.mxu0 %v1770
    %1856 = vmatprep.subr.mxu0 %v1775
    %1857 = vmatpush1.msra.mxu0 %v1774
    %1858 = vmatprep.subr.mxu0 %v1779
    %1859 = vmatpush1.msra.mxu0 %v1778
    %1860 = vmatprep.subr.mxu0 %v1783
    %1861 = vmatpush1.msra.mxu0 %v1782
    %1862 = vmatprep.subr.mxu0 %v1787
    %1863 = vmatpush1.msra.mxu0 %v1786
    %1864 = vmatprep.subr.mxu0 %v1791
    %1865 = vmatpush1.msra.mxu0 %v1790
    %1866 = vmatprep.subr.mxu0 %v1795
    %1867 = vmatpush1.msra.mxu0 %v1794
    %1868 = vmatprep.subr.mxu0 %v1799
    %1869 = vmatpush1.msra.mxu0 %v1798
    %1870 = vmatprep.subr.mxu0 %v1803
    %1871 = vmatpush1.msra.mxu0 %v1802
    %1872 = vmatprep.subr.mxu0 %v1807
    %1873 = vmatpush1.msra.mxu0 %v1806
    %1874 = vmatprep.subr.mxu0 %v1811
    %1875 = vmatpush1.msra.mxu0 %v1810
    %1876 = vmatprep.subr.mxu0 %v1815
    %1877 = vmatpush1.msra.mxu0 %v1814
    %1878 = vmatprep.subr.mxu0 %v1819
    %1879 = vmatpush1.msra.mxu0 %v1818
    %1880 = vmatprep.subr.mxu0 %v1823
    %1881 = vmatpush1.msra.mxu0 %v1822
    %1882 = vmatprep.subr.mxu0 %v1827
    %1883 = vmatpush1.msra.mxu0 %v1826
    %1884 = vmatprep.subr.mxu0 0.0
    %1885 = vmatpush1.msra.mxu0 0.0
    %1886 = vmatprep.subr.mxu0 0.0
    %1887 = vmatpush1.msra.mxu0 0.0
    %1888 = vmatprep.subr.mxu0 0.0
    %1889 = vmatpush1.msra.mxu0 0.0
    %1890 = vmatprep.subr.mxu0 0.0
    %1891 = vmatpush1.msra.mxu0 0.0
    %1892 = vmatprep.subr.mxu0 0.0
    %1893 = vmatpush1.msra.mxu0 0.0
    %1894 = vmatprep.subr.mxu0 0.0
    %1895 = vmatpush1.msra.mxu0 0.0
    %1896 = vmatprep.subr.mxu0 0.0
    %1897 = vmatpush1.msra.mxu0 0.0
    %1898 = vmatprep.subr.mxu0 0.0
    %1899 = vmatpush1.msra.mxu0 0.0
    %1900 = vmatprep.subr.mxu0 0.0
    %1901 = vmatpush1.msra.mxu0 0.0
    %1902 = vmatprep.subr.mxu0 0.0
    %1903 = vmatpush1.msra.mxu0 0.0
    %1904 = vmatprep.subr.mxu0 0.0
    %1905 = vmatpush1.msra.mxu0 0.0
    %1906 = vmatprep.subr.mxu0 0.0
    %1907 = vmatpush1.msra.mxu0 0.0
    %1908 = vmatprep.subr.mxu0 0.0
    %1909 = vmatpush1.msra.mxu0 0.0
    %1910 = vmatprep.subr.mxu0 0.0
    %1911 = vmatpush1.msra.mxu0 0.0
    %1912 = vmatprep.subr.mxu0 0.0
    %1913 = vmatpush1.msra.mxu0 0.0
    %1914 = vmatprep.subr.mxu0 0.0
    %1915 = vmatpush1.msra.mxu0 0.0
    %1916 = vmatprep.mubr.f32.mxu0 0.0
    %1917 = vmatmul.mubr.f32.gmra.mrb[0].mxu0 %v1765
    %v1918 = vpop.f32.mrb[0].mxu0
    %v1919 = vadd.f32 %v1835, %v1918
    %v1920 = vpop.f32.mrb[0].mxu0
    %v1921 = vadd.f32 %v1839, %v1920
    %1922 = vdwg.mxu0
    %1923 = vmatprep.subr.mxu0 %v1769
    %1924 = vmatpush1.msra.mxu0 %v1768
    %1925 = vmatprep.subr.mxu0 %v1773
    %1926 = vmatpush1.msra.mxu0 %v1772
    %1927 = vmatprep.subr.mxu0 %v1777
    %1928 = vmatpush1.msra.mxu0 %v1776
    %1929 = vmatprep.subr.mxu0 %v1781
    %1930 = vmatpush1.msra.mxu0 %v1780
    %1931 = vmatprep.subr.mxu0 %v1785
    %1932 = vmatpush1.msra.mxu0 %v1784
    %1933 = vmatprep.subr.mxu0 %v1789
    %1934 = vmatpush1.msra.mxu0 %v1788
    %1935 = vmatprep.subr.mxu0 %v1793
    %1936 = vmatpush1.msra.mxu0 %v1792
    %1937 = vmatprep.subr.mxu0 %v1797
    %1938 = vmatpush1.msra.mxu0 %v1796
    %1939 = vmatprep.subr.mxu0 %v1801
    %1940 = vmatpush1.msra.mxu0 %v1800
    %1941 = vmatprep.subr.mxu0 %v1805
    %1942 = vmatpush1.msra.mxu0 %v1804
    %1943 = vmatprep.subr.mxu0 %v1809
    %1944 = vmatpush1.msra.mxu0 %v1808
    %1945 = vmatprep.subr.mxu0 %v1813
    %1946 = vmatpush1.msra.mxu0 %v1812
    %1947 = vmatprep.subr.mxu0 %v1817
    %1948 = vmatpush1.msra.mxu0 %v1816
    %1949 = vmatprep.subr.mxu0 %v1821
    %1950 = vmatpush1.msra.mxu0 %v1820
    %1951 = vmatprep.subr.mxu0 %v1825
    %1952 = vmatpush1.msra.mxu0 %v1824
    %1953 = vmatprep.subr.mxu0 %v1829
    %1954 = vmatpush1.msra.mxu0 %v1828
    %1955 = vmatprep.subr.mxu0 0.0
    %1956 = vmatpush1.msra.mxu0 0.0
    %1957 = vmatprep.subr.mxu0 0.0
    %1958 = vmatpush1.msra.mxu0 0.0
    %1959 = vmatprep.subr.mxu0 0.0
    %1960 = vmatpush1.msra.mxu0 0.0
    %1961 = vmatprep.subr.mxu0 0.0
    %1962 = vmatpush1.msra.mxu0 0.0
    %1963 = vmatprep.subr.mxu0 0.0
    %1964 = vmatpush1.msra.mxu0 0.0
    %1965 = vmatprep.subr.mxu0 0.0
    %1966 = vmatpush1.msra.mxu0 0.0
    %1967 = vmatprep.subr.mxu0 0.0
    %1968 = vmatpush1.msra.mxu0 0.0
    %1969 = vmatprep.subr.mxu0 0.0
    %1970 = vmatpush1.msra.mxu0 0.0
    %1971 = vmatprep.subr.mxu0 0.0
    %1972 = vmatpush1.msra.mxu0 0.0
    %1973 = vmatprep.subr.mxu0 0.0
    %1974 = vmatpush1.msra.mxu0 0.0
    %1975 = vmatprep.subr.mxu0 0.0
    %1976 = vmatpush1.msra.mxu0 0.0
    %1977 = vmatprep.subr.mxu0 0.0
    %1978 = vmatpush1.msra.mxu0 0.0
    %1979 = vmatprep.subr.mxu0 0.0
    %1980 = vmatpush1.msra.mxu0 0.0
    %1981 = vmatprep.subr.mxu0 0.0
    %1982 = vmatpush1.msra.mxu0 0.0
    %1983 = vmatprep.subr.mxu0 0.0
    %1984 = vmatpush1.msra.mxu0 0.0
    %1985 = vmatprep.subr.mxu0 0.0
    %1986 = vmatpush1.msra.mxu0 0.0
    %1987 = vmatprep.mubr.f32.mxu0 0.0
    %1988 = vmatmul.mubr.f32.gmra.mrb[0].mxu0 %v1765
    %v1989 = vpop.f32.mrb[0].mxu0
    %v1990 = vadd.f32 %v1843, %v1989
    %v1991 = vpop.f32.mrb[0].mxu0
    %v1992 = vadd.f32 %v1847, %v1991
    %1993 = vdwg.mxu0
    %v1994 = vmul.f32 %v1919, %v1919
    %v1995 = vmul.f32 %v1921, %v1921
    %v1996 = vmul.f32 %v1990, %v1990
    %v1997 = vmul.f32 %v1992, %v1992
    %v1998 = vmul.f32 %v1919, %v1994
    %v1999 = vmul.f32 %v1921, %v1995
    %v2000 = vmul.f32 %v1990, %v1996
    %v2001 = vmul.f32 %v1992, %v1997
    %v2002 = vmul.f32 %v1998, 0.044715
    %v2003 = vmul.f32 %v1999, 0.044715
    %v2004 = vmul.f32 %v2000, 0.044715
    %v2005 = vmul.f32 %v2001, 0.044715
    %v2006 = vadd.f32 %v1919, %v2002
    %v2007 = vadd.f32 %v1921, %v2003
    %v2008 = vadd.f32 %v1990, %v2004
    %v2009 = vadd.f32 %v1992, %v2005
    %v2010 = vmul.f32 %v2006, 0.7978846
    %v2011 = vmul.f32 %v2007, 0.7978846
    %v2012 = vmul.f32 %v2008, 0.7978846
    %v2013 = vmul.f32 %v2009, 0.7978846
    %v2014 = vtanh.pop %v2010
    %v2015 = vtanh.pop %v2011
    %v2016 = vtanh.pop %v2012
    %v2017 = vtanh.pop %v2013
    %v2018 = vadd.f32 %v2014, 1.0
    %v2019 = vadd.f32 %v2015, 1.0
    %v2020 = vadd.f32 %v2016, 1.0
    %v2021 = vadd.f32 %v2017, 1.0
    %v2022 = vmul.f32 %v2018, 0.5
    %v2023 = vmul.f32 %v2019, 0.5
    %v2024 = vmul.f32 %v2020, 0.5
    %v2025 = vmul.f32 %v2021, 0.5
    %v2026 = vmul.f32 %v1919, %v2022
    %v2027 = vmul.f32 %v1921, %v2023
    %v2028 = vmul.f32 %v1990, %v2024
    %v2029 = vmul.f32 %v1992, %v2025
    %v2030 = vld [vmem:[#allocation14] sm:$0xff]
    %v2031 = vld [vmem:[#allocation14 + $0x8] sm:$0xff]
    %v2032 = vld [vmem:[#allocation14 + $0x10] sm:$0xff]
    %v2033 = vld [vmem:[#allocation14 + $0x18] sm:$0xff]
    %v2034 = vld [vmem:[#allocation14 + $0x20] sm:$0xff]
    %v2035 = vld [vmem:[#allocation14 + $0x28] sm:$0xff]
    %v2036 = vld [vmem:[#allocation14 + $0x30] sm:$0xff]
    %v2037 = vld [vmem:[#allocation14 + $0x38] sm:$0xff]
    %v2038 = vld [vmem:[#allocation14 + $0x40] sm:$0xff]
    %v2039 = vld [vmem:[#allocation14 + $0x48] sm:$0xff]
    %v2040 = vld [vmem:[#allocation14 + $0x50] sm:$0xff]
    %v2041 = vld [vmem:[#allocation14 + $0x58] sm:$0xff]
    %v2042 = vld [vmem:[#allocation14 + $0x60] sm:$0xff]
    %v2043 = vld [vmem:[#allocation14 + $0x68] sm:$0xff]
    %v2044 = vld [vmem:[#allocation14 + $0x70] sm:$0xff]
    %v2045 = vld [vmem:[#allocation14 + $0x78] sm:$0xff]
    %v2046 = vld [vmem:[#allocation14 + $0x80] sm:$0xff]
    %v2047 = vld [vmem:[#allocation14 + $0x88] sm:$0xff]
    %v2048 = vld [vmem:[#allocation14 + $0x90] sm:$0xff]
    %v2049 = vld [vmem:[#allocation14 + $0x98] sm:$0xff]
    %v2050 = vld [vmem:[#allocation14 + $0xa0] sm:$0xff]
    %v2051 = vld [vmem:[#allocation14 + $0xa8] sm:$0xff]
    %v2052 = vld [vmem:[#allocation14 + $0xb0] sm:$0xff]
    %v2053 = vld [vmem:[#allocation14 + $0xb8] sm:$0xff]
    %v2054 = vld [vmem:[#allocation14 + $0xc0] sm:$0xff]
    %v2055 = vld [vmem:[#allocation14 + $0xc8] sm:$0xff]
    %v2056 = vld [vmem:[#allocation14 + $0xd0] sm:$0xff]
    %v2057 = vld [vmem:[#allocation14 + $0xd8] sm:$0xff]
    %v2058 = vld [vmem:[#allocation14 + $0xe0] sm:$0xff]
    %v2059 = vld [vmem:[#allocation14 + $0xe8] sm:$0xff]
    %v2060 = vld [vmem:[#allocation14 + $0xf0] sm:$0xff]
    %v2061 = vld [vmem:[#allocation14 + $0xf8] sm:$0xff]
    %v2062 = vld [vmem:[#allocation14 + $0x100] sm:$0xff]
    %v2063 = vld [vmem:[#allocation14 + $0x108] sm:$0xff]
    %v2064 = vld [vmem:[#allocation14 + $0x110] sm:$0xff]
    %v2065 = vld [vmem:[#allocation14 + $0x118] sm:$0xff]
    %v2066 = vld [vmem:[#allocation14 + $0x120] sm:$0xff]
    %v2067 = vld [vmem:[#allocation14 + $0x128] sm:$0xff]
    %v2068 = vld [vmem:[#allocation14 + $0x130] sm:$0xff]
    %v2069 = vld [vmem:[#allocation14 + $0x138] sm:$0xff]
    %v2070 = vld [vmem:[#allocation14 + $0x140] sm:$0xff]
    %v2071 = vld [vmem:[#allocation14 + $0x148] sm:$0xff]
    %v2072 = vld [vmem:[#allocation14 + $0x150] sm:$0xff]
    %v2073 = vld [vmem:[#allocation14 + $0x158] sm:$0xff]
    %v2074 = vld [vmem:[#allocation14 + $0x160] sm:$0xff]
    %v2075 = vld [vmem:[#allocation14 + $0x168] sm:$0xff]
    %v2076 = vld [vmem:[#allocation14 + $0x170] sm:$0xff]
    %v2077 = vld [vmem:[#allocation14 + $0x178] sm:$0xff]
    %v2078 = vld [vmem:[#allocation14 + $0x180] sm:$0xff]
    %v2079 = vld [vmem:[#allocation14 + $0x188] sm:$0xff]
    %v2080 = vld [vmem:[#allocation14 + $0x190] sm:$0xff]
    %v2081 = vld [vmem:[#allocation14 + $0x198] sm:$0xff]
    %v2082 = vld [vmem:[#allocation14 + $0x1a0] sm:$0xff]
    %v2083 = vld [vmem:[#allocation14 + $0x1a8] sm:$0xff]
    %v2084 = vld [vmem:[#allocation14 + $0x1b0] sm:$0xff]
    %v2085 = vld [vmem:[#allocation14 + $0x1b8] sm:$0xff]
    %v2086 = vld [vmem:[#allocation14 + $0x1c0] sm:$0xff]
    %v2087 = vld [vmem:[#allocation14 + $0x1c8] sm:$0xff]
    %v2088 = vld [vmem:[#allocation14 + $0x1d0] sm:$0xff]
    %v2089 = vld [vmem:[#allocation14 + $0x1d8] sm:$0xff]
    %v2090 = vld [vmem:[#allocation14 + $0x1e0] sm:$0xff]
    %v2091 = vld [vmem:[#allocation14 + $0x1e8] sm:$0xff]
    %v2092 = vld [vmem:[#allocation14 + $0x1f0] sm:$0xff]
    %v2093 = vld [vmem:[#allocation14 + $0x1f8] sm:$0xff]
    %v2094 = vld [vmem:[%s19] sm:$0x1]
    %v2096 = vlaneseq
    %v2097 = vshrl.u32 %v2096, 7
    %v2098 = vsub.s32 0, %v2097
    %v2099 = vrot.slane %v2094, %v2098
    %2101 = vmatprep.subr.mxu0 0.0
    %2102 = vmatpush1.msra.mxu0 %v2030
    %2103 = vmatprep.subr.mxu0 0.0
    %2104 = vmatpush1.msra.mxu0 %v2031
    %2105 = vmatprep.subr.mxu0 0.0
    %2106 = vmatpush1.msra.mxu0 %v2032
    %2107 = vmatprep.subr.mxu0 0.0
    %2108 = vmatpush1.msra.mxu0 %v2033
    %2109 = vmatprep.subr.mxu0 0.0
    %2110 = vmatpush1.msra.mxu0 %v2034
    %2111 = vmatprep.subr.mxu0 0.0
    %2112 = vmatpush1.msra.mxu0 %v2035
    %2113 = vmatprep.subr.mxu0 0.0
    %2114 = vmatpush1.msra.mxu0 %v2036
    %2115 = vmatprep.subr.mxu0 0.0
    %2116 = vmatpush1.msra.mxu0 %v2037
    %2117 = vmatprep.subr.mxu0 0.0
    %2118 = vmatpush1.msra.mxu0 %v2038
    %2119 = vmatprep.subr.mxu0 0.0
    %2120 = vmatpush1.msra.mxu0 %v2039
    %2121 = vmatprep.subr.mxu0 0.0
    %2122 = vmatpush1.msra.mxu0 %v2040
    %2123 = vmatprep.subr.mxu0 0.0
    %2124 = vmatpush1.msra.mxu0 %v2041
    %2125 = vmatprep.subr.mxu0 0.0
    %2126 = vmatpush1.msra.mxu0 %v2042
    %2127 = vmatprep.subr.mxu0 0.0
    %2128 = vmatpush1.msra.mxu0 %v2043
    %2129 = vmatprep.subr.mxu0 0.0
    %2130 = vmatpush1.msra.mxu0 %v2044
    %2131 = vmatprep.subr.mxu0 0.0
    %2132 = vmatpush1.msra.mxu0 %v2045
    %2133 = vmatprep.subr.mxu0 0.0
    %2134 = vmatpush1.msra.mxu0 %v2046
    %2135 = vmatprep.subr.mxu0 0.0
    %2136 = vmatpush1.msra.mxu0 %v2047
    %2137 = vmatprep.subr.mxu0 0.0
    %2138 = vmatpush1.msra.mxu0 %v2048
    %2139 = vmatprep.subr.mxu0 0.0
    %2140 = vmatpush1.msra.mxu0 %v2049
    %2141 = vmatprep.subr.mxu0 0.0
    %2142 = vmatpush1.msra.mxu0 %v2050
    %2143 = vmatprep.subr.mxu0 0.0
    %2144 = vmatpush1.msra.mxu0 %v2051
    %2145 = vmatprep.subr.mxu0 0.0
    %2146 = vmatpush1.msra.mxu0 %v2052
    %2147 = vmatprep.subr.mxu0 0.0
    %2148 = vmatpush1.msra.mxu0 %v2053
    %2149 = vmatprep.subr.mxu0 0.0
    %2150 = vmatpush1.msra.mxu0 %v2054
    %2151 = vmatprep.subr.mxu0 0.0
    %2152 = vmatpush1.msra.mxu0 %v2055
    %2153 = vmatprep.subr.mxu0 0.0
    %2154 = vmatpush1.msra.mxu0 %v2056
    %2155 = vmatprep.subr.mxu0 0.0
    %2156 = vmatpush1.msra.mxu0 %v2057
    %2157 = vmatprep.subr.mxu0 0.0
    %2158 = vmatpush1.msra.mxu0 %v2058
    %2159 = vmatprep.subr.mxu0 0.0
    %2160 = vmatpush1.msra.mxu0 %v2059
    %2161 = vmatprep.subr.mxu0 0.0
    %2162 = vmatpush1.msra.mxu0 %v2060
    %2163 = vmatprep.subr.mxu0 0.0
    %2164 = vmatpush1.msra.mxu0 %v2061
    %2165 = vmatprep.mubr.f32.mxu0 %v2027
    %2166 = vmatmul.mubr.f32.gmra.mrb[0].mxu0 %v2026
    %v2167 = vpop.f32.mrb[0].mxu0
    %v2168 = vadd.f32 %v2099, %v2167
    %v2169 = vpop.f32.mrb[0].mxu0
    %2170 = vdwg.mxu0
    %2171 = vmatprep.subr.mxu0 0.0
    %2172 = vmatpush1.msra.mxu0 %v2062
    %2173 = vmatprep.subr.mxu0 0.0
    %2174 = vmatpush1.msra.mxu0 %v2063
    %2175 = vmatprep.subr.mxu0 0.0
    %2176 = vmatpush1.msra.mxu0 %v2064
    %2177 = vmatprep.subr.mxu0 0.0
    %2178 = vmatpush1.msra.mxu0 %v2065
    %2179 = vmatprep.subr.mxu0 0.0
    %2180 = vmatpush1.msra.mxu0 %v2066
    %2181 = vmatprep.subr.mxu0 0.0
    %2182 = vmatpush1.msra.mxu0 %v2067
    %2183 = vmatprep.subr.mxu0 0.0
    %2184 = vmatpush1.msra.mxu0 %v2068
    %2185 = vmatprep.subr.mxu0 0.0
    %2186 = vmatpush1.msra.mxu0 %v2069
    %2187 = vmatprep.subr.mxu0 0.0
    %2188 = vmatpush1.msra.mxu0 %v2070
    %2189 = vmatprep.subr.mxu0 0.0
    %2190 = vmatpush1.msra.mxu0 %v2071
    %2191 = vmatprep.subr.mxu0 0.0
    %2192 = vmatpush1.msra.mxu0 %v2072
    %2193 = vmatprep.subr.mxu0 0.0
    %2194 = vmatpush1.msra.mxu0 %v2073
    %2195 = vmatprep.subr.mxu0 0.0
    %2196 = vmatpush1.msra.mxu0 %v2074
    %2197 = vmatprep.subr.mxu0 0.0
    %2198 = vmatpush1.msra.mxu0 %v2075
    %2199 = vmatprep.subr.mxu0 0.0
    %2200 = vmatpush1.msra.mxu0 %v2076
    %2201 = vmatprep.subr.mxu0 0.0
    %2202 = vmatpush1.msra.mxu0 %v2077
    %2203 = vmatprep.subr.mxu0 0.0
    %2204 = vmatpush1.msra.mxu0 %v2078
    %2205 = vmatprep.subr.mxu0 0.0
    %2206 = vmatpush1.msra.mxu0 %v2079
    %2207 = vmatprep.subr.mxu0 0.0
    %2208 = vmatpush1.msra.mxu0 %v2080
    %2209 = vmatprep.subr.mxu0 0.0
    %2210 = vmatpush1.msra.mxu0 %v2081
    %2211 = vmatprep.subr.mxu0 0.0
    %2212 = vmatpush1.msra.mxu0 %v2082
    %2213 = vmatprep.subr.mxu0 0.0
    %2214 = vmatpush1.msra.mxu0 %v2083
    %2215 = vmatprep.subr.mxu0 0.0
    %2216 = vmatpush1.msra.mxu0 %v2084
    %2217 = vmatprep.subr.mxu0 0.0
    %2218 = vmatpush1.msra.mxu0 %v2085
    %2219 = vmatprep.subr.mxu0 0.0
    %2220 = vmatpush1.msra.mxu0 %v2086
    %2221 = vmatprep.subr.mxu0 0.0
    %2222 = vmatpush1.msra.mxu0 %v2087
    %2223 = vmatprep.subr.mxu0 0.0
    %2224 = vmatpush1.msra.mxu0 %v2088
    %2225 = vmatprep.subr.mxu0 0.0
    %2226 = vmatpush1.msra.mxu0 %v2089
    %2227 = vmatprep.subr.mxu0 0.0
    %2228 = vmatpush1.msra.mxu0 %v2090
    %2229 = vmatprep.subr.mxu0 0.0
    %2230 = vmatpush1.msra.mxu0 %v2091
    %2231 = vmatprep.subr.mxu0 0.0
    %2232 = vmatpush1.msra.mxu0 %v2092
    %2233 = vmatprep.subr.mxu0 0.0
    %2234 = vmatpush1.msra.mxu0 %v2093
    %2235 = vmatprep.mubr.f32.mxu0 %v2029
    %2236 = vmatmul.mubr.f32.gmra.mrb[0].mxu0 %v2028
    %v2237 = vpop.f32.mrb[0].mxu0
    %v2238 = vadd.f32 %v2168, %v2237
    %v2239 = vpop.f32.mrb[0].mxu0
    %2240 = vdwg.mxu0
    %v2241 = vadd.f32 %v1765, %v2238
    %v2242 = vld [vmem:[%s20] sm:$0x1]
    %v2243 = vld [vmem:[%s21] sm:$0x1]
    %v2244 = vsel %vm1738, %v2241, 0.0
    %2245 = vadd.xlane.f32.xlu0 %v2244
    %v2246 = vpop.xlane.xlu0 %2245
    %v2247 = vmul.f32 %v2246, %v427
    %v2248 = vsub.f32 %v2241, %v2247
    %v2249 = vmul.f32 %v2248, %v2248
    %v2250 = vsel %vm1738, %v2249, 0.0
    %2251 = vadd.xlane.f32.xlu0 %v2250
    %v2252 = vpop.xlane.xlu0 %2251
    %v2253 = vmul.f32 %v2252, %v427
    %v2254 = vadd.f32 %v2253, 1e-12
    %v2255 = vrsqrt.pop %v2254
    %v2256 = vmul.f32 %v2248, %v2255
    %v2258 = vlaneseq
    %v2259 = vshrl.u32 %v2258, 7
    %v2260 = vsub.s32 0, %v2259
    %v2261 = vrot.slane %v2242, %v2260
    %v2263 = vmul.f32 %v2256, %v2261
    %v2265 = vlaneseq
    %v2266 = vshrl.u32 %v2265, 7
    %v2267 = vsub.s32 0, %v2266
    %v2268 = vrot.slane %v2243, %v2267
    %v2270 = vadd.f32 %v2263, %v2268
    %2271 = vst [vmem:[#allocation15] sm:$0xf] %v2270
    // Predicated region
    $region118: #{tpu_custom_call.1} parent=1 // pred_check
      _
    $region119: #{tpu_custom_call.1} parent=1 // pred_check_branch
      %2273 = sbr.rel (0) target = $region121
    $region120: #{tpu_custom_call.1} parent=1 // pred_region
      %s2275 = ssub.s32 64, 64
      %2276 = vsyncadd [#allocation5], %s2275
      %s2278 = sshll.u32 [#allocation15], 4
      %s2279 = int_to_ptr.vmem [resolvable:$true] %s2278
      %2281 = dma.vmem_to_hbm [thread:$0]  %s2279, 64, %s22, [#allocation5]
    $region121: #{tpu_custom_call.1} parent=1 // pred_fallthru
      _
    // Predicated region
    $region122: #{tpu_custom_call.1} parent=1 // pred_check
      _
    $region123: #{tpu_custom_call.1} parent=1 // pred_check_branch
      %2283 = sbr.rel (0) target = $region125
    $region124: #{tpu_custom_call.1} parent=1 // pred_region
      %2284 = dma.done [#allocation5], 64
    $region125: #{tpu_custom_call.1} parent=1 // pred_fallthru
      _
    %2285 = vsyncpa [#allocation4], 1
    %2286 = vsyncpa [#allocation7], 1
    %2287 = vsyncpa [#allocation10], 1
    %2288 = vsyncpa [#allocation13], 1
    %2289 = vsyncpa [#allocation5], 1

</llo_original>
